<compile_context>
chip_gen: v6e
topology: v6e:2x2x1
jax: 0.10.0
libtpu: 0.0.40
codegen_flags: <defaults>
</compile_context>

<pallas_src>
import functools

import jax
import jax.numpy as jnp
from jax.experimental import pallas as pl
from jax.experimental.pallas import tpu as pltpu


# --------------------------------------------------------------------------
# Fused Pallas kernel: one grid step == one batch element, end to end
# --------------------------------------------------------------------------

def _fused_sd_kernel(
        tok_ref,      # (H, Hh)        token embeddings for this batch element
        emb_ref,      # (H, E)         conditioning embedding, pre-expanded per row
        eps_ref,      # (H, W*Cl)      N(0,1) noise for the latent sample
        w_te_ref,     # (Hh, Hh)       text-encoder linear
        b_te_ref,     # (1, Hh)
        w_ct_ref,     # (Hh, Hh)       conditioning: text part
        w_ce_ref,     # (E, Hh)        conditioning: embedding part
        b_cond_ref,   # (1, Hh)
        m_enc_ref,    # (3, W*Cl, 2*W*Cl)  encode conv, banded, [mean | logvar] cols
        b_enc_ref,    # (1, 2*W*Cl)
        m_dec_ref,    # (3, W*Cl, OL)      decode conv, banded, zero-padded to OL lanes
        b_dec_ref,    # (1, OL)
        out_ref,      # (H, OL)        decoded image rows, lane-dense (OL = 128)
        *, rows, lat_lanes, inv_scale):
    f32 = jnp.float32
    H, WCl = rows, lat_lanes

    # ---- text_encoder(prompt.input_ids)[0]: one (H,Hh)x(Hh,Hh) dot ----------
    text = jnp.tanh(
        jnp.dot(tok_ref[...], w_te_ref[...], preferred_element_type=f32)
        + b_te_ref[...])

    # ---- conditioning_layer(text_embeddings, embedding) ---------------------
    # concat([text, emb]) @ W  ==  text @ Wt + emb @ We   (weights pre-split)
    cond = (jnp.dot(text, w_ct_ref[...], preferred_element_type=f32)
            + jnp.dot(emb_ref[...], w_ce_ref[...], preferred_element_type=f32)
            + b_cond_ref[...])                                    # (H, W*Cl)

    # Halo masks, computed once and reused by both conv stages.
    ridx = jax.lax.broadcasted_iota(jnp.int32, (H, WCl), 0)
    top = ridx == 0
    bot = ridx == H - 1

    def conv3(x, m_ref, bias_row):
        # 3x3 'SAME' conv as 3 banded row-conv matmuls (one per vertical tap).
        # The vertical halo rows are produced in-register via a sublane roll
        # (XLU slot, effectively free) + mask — no VMEM halo scratch.
        s0 = jnp.where(top, 0.0, pltpu.roll(x, 1, axis=0))        # row h-1
        s2 = jnp.where(bot, 0.0, pltpu.roll(x, H - 1, axis=0))    # row h+1
        return (jnp.dot(s0, m_ref[0], preferred_element_type=f32)
                + jnp.dot(x, m_ref[1], preferred_element_type=f32)
                + jnp.dot(s2, m_ref[2], preferred_element_type=f32)
                + bias_row)

    # ---- vae.encode(...): fused mean|logvar conv -----------------------------
    moments = conv3(cond, m_enc_ref, b_enc_ref[...])              # (H, 2*W*Cl)
    mean = moments[:, :WCl]
    logvar = jnp.clip(moments[:, WCl:], -30.0, 20.0)              # diffusers clamp

    # ---- latent_dist.sample(); latents / scaling_factor (fused) -------------
    lat = (mean + jnp.exp(0.5 * logvar) * eps_ref[...]) * inv_scale

    # ---- vae.decode(latents).sample(): lane-dense output conv ---------------
    # m_dec / b_dec are zero-padded to OL lanes at init, so this single store
    # is a full-width unmasked vst.
    out_ref[...] = conv3(lat, m_dec_ref, b_dec_ref[...]).astype(out_ref.dtype)


# --------------------------------------------------------------------------
# Weight packing helpers (init time, outside the kernel)
# --------------------------------------------------------------------------

def _band_row_conv_matrices(w_conv, width):
    """(3, 3, Cin, Cout) conv kernel -> (3, width*Cin, width*Cout) banded
    matrices, one per vertical tap ky.  Each maps an image row flattened as
    (w, Cin) lanes to (w, Cout) lanes; the horizontal zero padding of a 'SAME'
    conv is folded into the band structure."""
    _, _, cin, cout = w_conv.shape
    mats = []
    for ky in range(3):
        m = jnp.zeros((width * cin, width * cout), jnp.float32)
        for wo in range(width):
            for kx in range(3):
                wi = wo + kx - 1
                if 0 <= wi < width:
                    m = m.at[wi * cin:(wi + 1) * cin,
                             wo * cout:(wo + 1) * cout].set(w_conv[ky, kx])
        mats.append(m)
    return jnp.stack(mats)


# --------------------------------------------------------------------------
# Synthetic "ModifiedStableDiffusionModel"
# --------------------------------------------------------------------------

class ModifiedStableDiffusionPallas:
    def __init__(self, key, *, vocab=16, seq=8, hidden=32, emb_dim=16,
                 lat_h=8, lat_w=8, lat_c=4, img_c=3):
        # layout trick: hidden == lat_w*lat_c and seq == lat_h, so the
        # (H, hidden) conditioned activation IS the h x (w,c) latent slab.
        assert seq * hidden == lat_h * lat_w * lat_c
        assert hidden == lat_w * lat_c and seq == lat_h
        self.seq, self.hidden, self.emb_dim = seq, hidden, emb_dim
        self.lat_h, self.lat_w, self.lat_c, self.img_c = lat_h, lat_w, lat_c, img_c
        self.scaling_factor = 0.18215          # vae.config.scaling_factor

        ks = jax.random.split(key, 8)
        n = jax.random.normal
        # text encoder surrogate: embedding table + tanh-linear
        self.tok_table = 0.05 * n(ks[0], (vocab, hidden), jnp.float32)
        self.w_te = 0.05 * n(ks[1], (hidden, hidden), jnp.float32)
        self.b_te = jnp.zeros((hidden,), jnp.float32)
        # conditioning layer, pre-split: concat([text, emb]) @ W == text@Wt + emb@We
        self.w_cond_text = 0.05 * n(ks[2], (hidden, hidden), jnp.float32)
        self.w_cond_emb = 0.05 * n(ks[6], (emb_dim, hidden), jnp.float32)
        self.b_cond = jnp.zeros((hidden,), jnp.float32)
        # VAE encoder conv: lat_c -> 2*lat_c (mean, logvar); decoder: lat_c -> img_c
        self.w_enc = 0.05 * n(ks[3], (3, 3, lat_c, 2 * lat_c), jnp.float32)
        self.b_enc = jnp.zeros((2 * lat_c,), jnp.float32)
        self.w_dec = 0.05 * n(ks[4], (3, 3, lat_c, img_c), jnp.float32)
        self.b_dec = jnp.zeros((img_c,), jnp.float32)
        self.noise_key = ks[5]

        # ---- kernel-ready packing (hoisted out of forward) -------------------
        W = lat_w
        self.b_te_row = self.b_te.reshape(1, hidden)
        self.b_cond_row = self.b_cond.reshape(1, hidden)

        # encode conv: [mean | logvar] output columns fused into one matrix set
        m_mean = _band_row_conv_matrices(self.w_enc[..., :lat_c], W)
        m_lvar = _band_row_conv_matrices(self.w_enc[..., lat_c:], W)
        self.m_enc = jnp.concatenate([m_mean, m_lvar], axis=-1)      # (3, WCl, 2WCl)
        self.b_enc_row = jnp.concatenate(
            [jnp.tile(self.b_enc[:lat_c], W),
             jnp.tile(self.b_enc[lat_c:], W)]).reshape(1, 2 * W * lat_c)

        # decode conv: zero-pad output columns to a lane-dense width (128)
        out_cols = W * img_c
        self.out_lanes = ((out_cols + 127) // 128) * 128
        m_dec = _band_row_conv_matrices(self.w_dec, W)                # (3, WCl, out_cols)
        self.m_dec = jnp.pad(m_dec, ((0, 0), (0, 0), (0, self.out_lanes - out_cols)))
        self.b_dec_row = jnp.pad(jnp.tile(self.b_dec, W),
                                 (0, self.out_lanes - out_cols)).reshape(1, self.out_lanes)

    def forward(self, input_ids, embedding):
        B, S = input_ids.shape
        Hh, Hr, W = self.hidden, self.lat_h, self.lat_w
        Cl, Ci, E = self.lat_c, self.img_c, self.emb_dim
        OL = self.out_lanes

        # token-embedding gather + per-row expansion of the conditioning
        # embedding + noise draw: tiny XLA layout glue around the fused kernel.
        tok2d = jnp.take(self.tok_table, input_ids, axis=0).reshape(B * S, Hh)
        embx = jnp.repeat(embedding, Hr, axis=0)                       # (B*Hr, E)
        eps2d = jax.random.normal(
            self.noise_key, (B, Hr, W, Cl), jnp.float32).reshape(B * Hr, W * Cl)

        kern = functools.partial(
            _fused_sd_kernel, rows=Hr, lat_lanes=W * Cl,
            inv_scale=1.0 / self.scaling_factor)

        def per_batch(r, c):                 # blocks indexed by the batch grid axis
            return pl.BlockSpec((r, c), lambda b: (b, 0))

        def const2(shape):                   # whole-array weight blocks
            return pl.BlockSpec(shape, lambda b: (0, 0))

        def const3(shape):
            return pl.BlockSpec(shape, lambda b: (0, 0, 0))

        img2d = pl.pallas_call(
            kern,
            out_shape=jax.ShapeDtypeStruct((B * Hr, OL), jnp.float32),
            grid=(B,),
            in_specs=[
                per_batch(Hr, Hh),                 # tok2d
                per_batch(Hr, E),                  # embx
                per_batch(Hr, W * Cl),             # eps2d
                const2(self.w_te.shape),
                const2(self.b_te_row.shape),
                const2(self.w_cond_text.shape),
                const2(self.w_cond_emb.shape),
                const2(self.b_cond_row.shape),
                const3(self.m_enc.shape),
                const2(self.b_enc_row.shape),
                const3(self.m_dec.shape),
                const2(self.b_dec_row.shape),
            ],
            out_specs=pl.BlockSpec((Hr, OL), lambda b: (b, 0)),
            compiler_params=pltpu.CompilerParams(
                dimension_semantics=("parallel",)),   # v7x: batch across cores
        )(tok2d, embx, eps2d,
          self.w_te, self.b_te_row,
          self.w_cond_text, self.w_cond_emb, self.b_cond_row,
          self.m_enc, self.b_enc_row,
          self.m_dec, self.b_dec_row)

        # drop the lane padding, (b*h, w*c) slab -> NHWC -> NCHW (tiny glue)
        img = img2d[:, :W * Ci].reshape(B, Hr, W, Ci)
        return jnp.transpose(img, (0, 3, 1, 2))


# --------------------------------------------------------------------------
# Pure-JAX reference (same dataflow) for a correctness check
# --------------------------------------------------------------------------

def _reference_forward(model, input_ids, embedding):
    hp = jax.lax.Precision.HIGHEST
    B, _ = input_ids.shape
    tok = jnp.take(model.tok_table, input_ids, axis=0)                  # (B,S,Hh)
    text = jnp.tanh(
        jnp.einsum("bsh,hk->bsk", tok, model.w_te, precision=hp) + model.b_te)
    cond = (jnp.einsum("bsh,hk->bsk", text, model.w_cond_text, precision=hp)
            + jnp.einsum("be,ek->bk", embedding, model.w_cond_emb,
                         precision=hp)[:, None, :]
            + model.b_cond)
    x = cond.reshape(B, model.lat_h, model.lat_w, model.lat_c)
    dn = ("NHWC", "HWIO", "NHWC")
    moments = jax.lax.conv_general_dilated(
        x, model.w_enc, (1, 1), "SAME", dimension_numbers=dn,
        precision=hp) + model.b_enc
    mean, logvar = moments[..., :model.lat_c], moments[..., model.lat_c:]
    logvar = jnp.clip(logvar, -30.0, 20.0)
    eps = jax.random.normal(model.noise_key, mean.shape, mean.dtype)
    lat = (mean + jnp.exp(0.5 * logvar) * eps) / model.scaling_factor
    img = jax.lax.conv_general_dilated(
        lat, model.w_dec, (1, 1), "SAME", dimension_numbers=dn,
        precision=hp) + model.b_dec
    return jnp.transpose(img, (0, 3, 1, 2))


# --------------------------------------------------------------------------
# Demo
# --------------------------------------------------------------------------

if __name__ == "__main__":
    key = jax.random.PRNGKey(0)
    k_model, k_ids, k_emb = jax.random.split(key, 3)

    B, SEQ, VOCAB, EMB = 2, 8, 16, 16
    model = ModifiedStableDiffusionPallas(k_model, vocab=VOCAB, seq=SEQ,
                                          hidden=32, emb_dim=EMB)

    # prompt.input_ids and the extra conditioning embedding
    input_ids = jax.random.randint(k_ids, (B, SEQ), 0, VOCAB, dtype=jnp.int32)
    embedding = jax.random.normal(k_emb, (B, EMB), jnp.float32)

    image = jax.jit(model.forward)(input_ids, embedding)
    jax.block_until_ready(image)

    assert image.shape == (B, 3, 8, 8), image.shape
    assert image.dtype == jnp.float32
    assert bool(jnp.all(jnp.isfinite(image)))

    ref = _reference_forward(model, input_ids, embedding)
    max_err = float(jnp.max(jnp.abs(image - ref)))
    assert max_err < 5e-2, max_err     # loose: tolerates MXU vs XLA precision

    print("KERNEL_OK")
</pallas_src>

<mosaic_0001>
module attributes {stable_mosaic.version = 11 : i64} {
  func.func @_fused_sd_kernel(%arg0: i32, %arg1: memref<8x32xf32, #tpu.memory_space<vmem>>, %arg2: memref<8x16xf32, #tpu.memory_space<vmem>>, %arg3: memref<8x32xf32, #tpu.memory_space<vmem>>, %arg4: memref<32x32xf32, #tpu.memory_space<vmem>>, %arg5: memref<1x32xf32, #tpu.memory_space<vmem>>, %arg6: memref<32x32xf32, #tpu.memory_space<vmem>>, %arg7: memref<16x32xf32, #tpu.memory_space<vmem>>, %arg8: memref<1x32xf32, #tpu.memory_space<vmem>>, %arg9: memref<3x32x64xf32, #tpu.memory_space<vmem>>, %arg10: memref<1x64xf32, #tpu.memory_space<vmem>>, %arg11: memref<3x32x128xf32, #tpu.memory_space<vmem>>, %arg12: memref<1x128xf32, #tpu.memory_space<vmem>>, %arg13: memref<8x128xf32, #tpu.memory_space<vmem>>) attributes {dimension_semantics = [#tpu.dimension_semantics<parallel>], iteration_bounds = array<i64: 2>, scalar_prefetch = 0 : i64, scratch_operands = 0 : i64, tpu.core_type = #tpu.core_type<tc>, window_params = [{transform_indices = @transform_0, window_bounds = array<i64: 8, 32>}, {transform_indices = @transform_1, window_bounds = array<i64: 8, 16>}, {transform_indices = @transform_2, window_bounds = array<i64: 8, 32>}, {pipeline_mode = #tpu.pipeline_mode<synchronous>, transform_indices = @transform_3, window_bounds = array<i64: 32, 32>}, {pipeline_mode = #tpu.pipeline_mode<synchronous>, transform_indices = @transform_4, window_bounds = array<i64: 1, 32>}, {pipeline_mode = #tpu.pipeline_mode<synchronous>, transform_indices = @transform_5, window_bounds = array<i64: 32, 32>}, {pipeline_mode = #tpu.pipeline_mode<synchronous>, transform_indices = @transform_6, window_bounds = array<i64: 16, 32>}, {pipeline_mode = #tpu.pipeline_mode<synchronous>, transform_indices = @transform_7, window_bounds = array<i64: 1, 32>}, {pipeline_mode = #tpu.pipeline_mode<synchronous>, transform_indices = @transform_8, window_bounds = array<i64: 3, 32, 64>}, {pipeline_mode = #tpu.pipeline_mode<synchronous>, transform_indices = @transform_9, window_bounds = array<i64: 1, 64>}, {pipeline_mode = #tpu.pipeline_mode<synchronous>, transform_indices = @transform_10, window_bounds = array<i64: 3, 32, 128>}, {pipeline_mode = #tpu.pipeline_mode<synchronous>, transform_indices = @transform_11, window_bounds = array<i64: 1, 128>}, {transform_indices = @transform_12, window_bounds = array<i64: 8, 128>}]} {
    %c0 = arith.constant 0 : index
    %c0_0 = arith.constant 0 : index
    %0 = vector.load %arg1[%c0, %c0_0] : memref<8x32xf32, #tpu.memory_space<vmem>>, vector<8x32xf32>
    %c0_1 = arith.constant 0 : index
    %c0_2 = arith.constant 0 : index
    %1 = vector.load %arg4[%c0_1, %c0_2] : memref<32x32xf32, #tpu.memory_space<vmem>>, vector<32x32xf32>
    %cst = arith.constant dense<0.000000e+00> : vector<8x32xf32>
    %2 = tpu.matmul %0, %1, %cst {dimension_numbers = #tpu.dot_dimension_numbers<[1], [0], [0], [1], [0, 0, 1, 1], [], []>} : vector<8x32xf32>, vector<32x32xf32>, vector<8x32xf32> -> vector<8x32xf32>
    %c0_3 = arith.constant 0 : index
    %c0_4 = arith.constant 0 : index
    %3 = vector.load %arg5[%c0_3, %c0_4] : memref<1x32xf32, #tpu.memory_space<vmem>>, vector<1x32xf32>
    %4 = vector.broadcast %3 : vector<1x32xf32> to vector<8x32xf32>
    %5 = arith.addf %2, %4 : vector<8x32xf32>
    %6 = math.tanh %5 : vector<8x32xf32>
    %c0_5 = arith.constant 0 : index
    %c0_6 = arith.constant 0 : index
    %7 = vector.load %arg6[%c0_5, %c0_6] : memref<32x32xf32, #tpu.memory_space<vmem>>, vector<32x32xf32>
    %cst_7 = arith.constant dense<0.000000e+00> : vector<8x32xf32>
    %8 = tpu.matmul %6, %7, %cst_7 {dimension_numbers = #tpu.dot_dimension_numbers<[1], [0], [0], [1], [0, 0, 1, 1], [], []>} : vector<8x32xf32>, vector<32x32xf32>, vector<8x32xf32> -> vector<8x32xf32>
    %c0_8 = arith.constant 0 : index
    %c0_9 = arith.constant 0 : index
    %9 = vector.load %arg2[%c0_8, %c0_9] : memref<8x16xf32, #tpu.memory_space<vmem>>, vector<8x16xf32>
    %c0_10 = arith.constant 0 : index
    %c0_11 = arith.constant 0 : index
    %10 = vector.load %arg7[%c0_10, %c0_11] : memref<16x32xf32, #tpu.memory_space<vmem>>, vector<16x32xf32>
    %cst_12 = arith.constant dense<0.000000e+00> : vector<8x32xf32>
    %11 = tpu.matmul %9, %10, %cst_12 {dimension_numbers = #tpu.dot_dimension_numbers<[1], [0], [0], [1], [0, 0, 1, 1], [], []>} : vector<8x16xf32>, vector<16x32xf32>, vector<8x32xf32> -> vector<8x32xf32>
    %12 = arith.addf %8, %11 : vector<8x32xf32>
    %c0_13 = arith.constant 0 : index
    %c0_14 = arith.constant 0 : index
    %13 = vector.load %arg8[%c0_13, %c0_14] : memref<1x32xf32, #tpu.memory_space<vmem>>, vector<1x32xf32>
    %14 = vector.broadcast %13 : vector<1x32xf32> to vector<8x32xf32>
    %15 = arith.addf %12, %14 : vector<8x32xf32>
    %16 = tpu.iota {dimensions = array<i32: 0>} : vector<8x32xi32>
    %c0_i32 = arith.constant 0 : i32
    %17 = vector.broadcast %c0_i32 : i32 to vector<8x32xi32>
    %18 = arith.cmpi eq, %16, %17 : vector<8x32xi32>
    %c7_i32 = arith.constant 7 : i32
    %19 = vector.broadcast %c7_i32 : i32 to vector<8x32xi32>
    %20 = arith.cmpi eq, %16, %19 : vector<8x32xi32>
    %c0_15 = arith.constant 0 : index
    %c0_16 = arith.constant 0 : index
    %21 = vector.load %arg10[%c0_15, %c0_16] : memref<1x64xf32, #tpu.memory_space<vmem>>, vector<1x64xf32>
    %c1_i32 = arith.constant 1 : i32
    %22 = tpu.dynamic_rotate %15 by %c1_i32 dim 0 : vector<8x32xf32>, i32 -> vector<8x32xf32>
    %cst_17 = arith.constant 0.000000e+00 : f32
    %23 = vector.broadcast %cst_17 : f32 to vector<8x32xf32>
    %24 = arith.select %18, %23, %22 : vector<8x32xi1>, vector<8x32xf32>
    %c7_i32_18 = arith.constant 7 : i32
    %25 = tpu.dynamic_rotate %15 by %c7_i32_18 dim 0 : vector<8x32xf32>, i32 -> vector<8x32xf32>
    %cst_19 = arith.constant 0.000000e+00 : f32
    %26 = vector.broadcast %cst_19 : f32 to vector<8x32xf32>
    %27 = arith.select %20, %26, %25 : vector<8x32xi1>, vector<8x32xf32>
    %c0_20 = arith.constant 0 : index
    %c0_21 = arith.constant 0 : index
    %c0_22 = arith.constant 0 : index
    %28 = vector.load %arg9[%c0_20, %c0_21, %c0_22] : memref<3x32x64xf32, #tpu.memory_space<vmem>>, vector<1x32x64xf32>
    %29 = vector.shape_cast %28 : vector<1x32x64xf32> to vector<32x64xf32>
    %cst_23 = arith.constant dense<0.000000e+00> : vector<8x64xf32>
    %30 = tpu.matmul %24, %29, %cst_23 {dimension_numbers = #tpu.dot_dimension_numbers<[1], [0], [0], [1], [0, 0, 1, 1], [], []>} : vector<8x32xf32>, vector<32x64xf32>, vector<8x64xf32> -> vector<8x64xf32>
    %c1 = arith.constant 1 : index
    %c0_24 = arith.constant 0 : index
    %c0_25 = arith.constant 0 : index
    %31 = vector.load %arg9[%c1, %c0_24, %c0_25] : memref<3x32x64xf32, #tpu.memory_space<vmem>>, vector<1x32x64xf32>
    %32 = vector.shape_cast %31 : vector<1x32x64xf32> to vector<32x64xf32>
    %cst_26 = arith.constant dense<0.000000e+00> : vector<8x64xf32>
    %33 = tpu.matmul %15, %32, %cst_26 {dimension_numbers = #tpu.dot_dimension_numbers<[1], [0], [0], [1], [0, 0, 1, 1], [], []>} : vector<8x32xf32>, vector<32x64xf32>, vector<8x64xf32> -> vector<8x64xf32>
    %34 = arith.addf %30, %33 : vector<8x64xf32>
    %c2 = arith.constant 2 : index
    %c0_27 = arith.constant 0 : index
    %c0_28 = arith.constant 0 : index
    %35 = vector.load %arg9[%c2, %c0_27, %c0_28] : memref<3x32x64xf32, #tpu.memory_space<vmem>>, vector<1x32x64xf32>
    %36 = vector.shape_cast %35 : vector<1x32x64xf32> to vector<32x64xf32>
    %cst_29 = arith.constant dense<0.000000e+00> : vector<8x64xf32>
    %37 = tpu.matmul %27, %36, %cst_29 {dimension_numbers = #tpu.dot_dimension_numbers<[1], [0], [0], [1], [0, 0, 1, 1], [], []>} : vector<8x32xf32>, vector<32x64xf32>, vector<8x64xf32> -> vector<8x64xf32>
    %38 = arith.addf %34, %37 : vector<8x64xf32>
    %39 = vector.broadcast %21 : vector<1x64xf32> to vector<8x64xf32>
    %40 = arith.addf %38, %39 : vector<8x64xf32>
    %41 = vector.extract_strided_slice %40 {offsets = [0, 0], sizes = [8, 32], strides = [1, 1]} : vector<8x64xf32> to vector<8x32xf32>
    %42 = vector.extract_strided_slice %40 {offsets = [0, 32], sizes = [8, 32], strides = [1, 1]} : vector<8x64xf32> to vector<8x32xf32>
    %cst_30 = arith.constant -3.000000e+01 : f32
    %cst_31 = arith.constant 2.000000e+01 : f32
    %43 = vector.broadcast %cst_30 : f32 to vector<8x32xf32>
    %44 = arith.maximumf %43, %42 : vector<8x32xf32>
    %45 = vector.broadcast %cst_31 : f32 to vector<8x32xf32>
    %46 = arith.minimumf %45, %44 : vector<8x32xf32>
    %cst_32 = arith.constant 5.000000e-01 : f32
    %47 = vector.broadcast %cst_32 : f32 to vector<8x32xf32>
    %48 = arith.mulf %47, %46 : vector<8x32xf32>
    %49 = math.exp %48 : vector<8x32xf32>
    %c0_33 = arith.constant 0 : index
    %c0_34 = arith.constant 0 : index
    %50 = vector.load %arg3[%c0_33, %c0_34] : memref<8x32xf32, #tpu.memory_space<vmem>>, vector<8x32xf32>
    %51 = arith.mulf %49, %50 : vector<8x32xf32>
    %52 = arith.addf %41, %51 : vector<8x32xf32>
    %cst_35 = arith.constant 5.4899807 : f32
    %53 = vector.broadcast %cst_35 : f32 to vector<8x32xf32>
    %54 = arith.mulf %52, %53 : vector<8x32xf32>
    %c0_36 = arith.constant 0 : index
    %c0_37 = arith.constant 0 : index
    %55 = vector.load %arg12[%c0_36, %c0_37] : memref<1x128xf32, #tpu.memory_space<vmem>>, vector<1x128xf32>
    %c1_i32_38 = arith.constant 1 : i32
    %56 = tpu.dynamic_rotate %54 by %c1_i32_38 dim 0 : vector<8x32xf32>, i32 -> vector<8x32xf32>
    %cst_39 = arith.constant 0.000000e+00 : f32
    %57 = vector.broadcast %cst_39 : f32 to vector<8x32xf32>
    %58 = arith.select %18, %57, %56 : vector<8x32xi1>, vector<8x32xf32>
    %c7_i32_40 = arith.constant 7 : i32
    %59 = tpu.dynamic_rotate %54 by %c7_i32_40 dim 0 : vector<8x32xf32>, i32 -> vector<8x32xf32>
    %cst_41 = arith.constant 0.000000e+00 : f32
    %60 = vector.broadcast %cst_41 : f32 to vector<8x32xf32>
    %61 = arith.select %20, %60, %59 : vector<8x32xi1>, vector<8x32xf32>
    %c0_42 = arith.constant 0 : index
    %c0_43 = arith.constant 0 : index
    %c0_44 = arith.constant 0 : index
    %62 = vector.load %arg11[%c0_42, %c0_43, %c0_44] : memref<3x32x128xf32, #tpu.memory_space<vmem>>, vector<1x32x128xf32>
    %63 = vector.shape_cast %62 : vector<1x32x128xf32> to vector<32x128xf32>
    %cst_45 = arith.constant dense<0.000000e+00> : vector<8x128xf32>
    %64 = tpu.matmul %58, %63, %cst_45 {dimension_numbers = #tpu.dot_dimension_numbers<[1], [0], [0], [1], [0, 0, 1, 1], [], []>} : vector<8x32xf32>, vector<32x128xf32>, vector<8x128xf32> -> vector<8x128xf32>
    %c1_46 = arith.constant 1 : index
    %c0_47 = arith.constant 0 : index
    %c0_48 = arith.constant 0 : index
    %65 = vector.load %arg11[%c1_46, %c0_47, %c0_48] : memref<3x32x128xf32, #tpu.memory_space<vmem>>, vector<1x32x128xf32>
    %66 = vector.shape_cast %65 : vector<1x32x128xf32> to vector<32x128xf32>
    %cst_49 = arith.constant dense<0.000000e+00> : vector<8x128xf32>
    %67 = tpu.matmul %54, %66, %cst_49 {dimension_numbers = #tpu.dot_dimension_numbers<[1], [0], [0], [1], [0, 0, 1, 1], [], []>} : vector<8x32xf32>, vector<32x128xf32>, vector<8x128xf32> -> vector<8x128xf32>
    %68 = arith.addf %64, %67 : vector<8x128xf32>
    %c2_50 = arith.constant 2 : index
    %c0_51 = arith.constant 0 : index
    %c0_52 = arith.constant 0 : index
    %69 = vector.load %arg11[%c2_50, %c0_51, %c0_52] : memref<3x32x128xf32, #tpu.memory_space<vmem>>, vector<1x32x128xf32>
    %70 = vector.shape_cast %69 : vector<1x32x128xf32> to vector<32x128xf32>
    %cst_53 = arith.constant dense<0.000000e+00> : vector<8x128xf32>
    %71 = tpu.matmul %61, %70, %cst_53 {dimension_numbers = #tpu.dot_dimension_numbers<[1], [0], [0], [1], [0, 0, 1, 1], [], []>} : vector<8x32xf32>, vector<32x128xf32>, vector<8x128xf32> -> vector<8x128xf32>
    %72 = arith.addf %68, %71 : vector<8x128xf32>
    %73 = vector.broadcast %55 : vector<1x128xf32> to vector<8x128xf32>
    %74 = arith.addf %72, %73 : vector<8x128xf32>
    %c0_54 = arith.constant 0 : index
    %c0_55 = arith.constant 0 : index
    %75 = vector.load %arg13[%c0_54, %c0_55] : memref<8x128xf32, #tpu.memory_space<vmem>>, vector<8x128xf32>
    tpu.vector_store %arg13[%c0_54, %c0_55], %74 {strides = array<i32>} : memref<8x128xf32, #tpu.memory_space<vmem>>, vector<8x128xf32>,
    return
  }
  func.func @transform_0(%arg0: i32) -> (i32, i32) {
    %c0_i32 = arith.constant 0 : i32
    %c0_i32_0 = arith.constant 0 : i32
    return %arg0, %c0_i32 : i32, i32
  }
  func.func @transform_1(%arg0: i32) -> (i32, i32) {
    %c0_i32 = arith.constant 0 : i32
    %c0_i32_0 = arith.constant 0 : i32
    return %arg0, %c0_i32 : i32, i32
  }
  func.func @transform_2(%arg0: i32) -> (i32, i32) {
    %c0_i32 = arith.constant 0 : i32
    %c0_i32_0 = arith.constant 0 : i32
    return %arg0, %c0_i32 : i32, i32
  }
  func.func @transform_3(%arg0: i32) -> (i32, i32) {
    %c0_i32 = arith.constant 0 : i32
    %c0_i32_0 = arith.constant 0 : i32
    %c0_i32_1 = arith.constant 0 : i32
    return %c0_i32, %c0_i32_0 : i32, i32
  }
  func.func @transform_4(%arg0: i32) -> (i32, i32) {
    %c0_i32 = arith.constant 0 : i32
    %c0_i32_0 = arith.constant 0 : i32
    %c0_i32_1 = arith.constant 0 : i32
    return %c0_i32, %c0_i32_0 : i32, i32
  }
  func.func @transform_5(%arg0: i32) -> (i32, i32) {
    %c0_i32 = arith.constant 0 : i32
    %c0_i32_0 = arith.constant 0 : i32
    %c0_i32_1 = arith.constant 0 : i32
    return %c0_i32, %c0_i32_0 : i32, i32
  }
  func.func @transform_6(%arg0: i32) -> (i32, i32) {
    %c0_i32 = arith.constant 0 : i32
    %c0_i32_0 = arith.constant 0 : i32
    %c0_i32_1 = arith.constant 0 : i32
    return %c0_i32, %c0_i32_0 : i32, i32
  }
  func.func @transform_7(%arg0: i32) -> (i32, i32) {
    %c0_i32 = arith.constant 0 : i32
    %c0_i32_0 = arith.constant 0 : i32
    %c0_i32_1 = arith.constant 0 : i32
    return %c0_i32, %c0_i32_0 : i32, i32
  }
  func.func @transform_8(%arg0: i32) -> (i32, i32, i32) {
    %c0_i32 = arith.constant 0 : i32
    %c0_i32_0 = arith.constant 0 : i32
    %c0_i32_1 = arith.constant 0 : i32
    %c0_i32_2 = arith.constant 0 : i32
    return %c0_i32, %c0_i32_0, %c0_i32_1 : i32, i32, i32
  }
  func.func @transform_9(%arg0: i32) -> (i32, i32) {
    %c0_i32 = arith.constant 0 : i32
    %c0_i32_0 = arith.constant 0 : i32
    %c0_i32_1 = arith.constant 0 : i32
    return %c0_i32, %c0_i32_0 : i32, i32
  }
  func.func @transform_10(%arg0: i32) -> (i32, i32, i32) {
    %c0_i32 = arith.constant 0 : i32
    %c0_i32_0 = arith.constant 0 : i32
    %c0_i32_1 = arith.constant 0 : i32
    %c0_i32_2 = arith.constant 0 : i32
    return %c0_i32, %c0_i32_0, %c0_i32_1 : i32, i32, i32
  }
  func.func @transform_11(%arg0: i32) -> (i32, i32) {
    %c0_i32 = arith.constant 0 : i32
    %c0_i32_0 = arith.constant 0 : i32
    %c0_i32_1 = arith.constant 0 : i32
    return %c0_i32, %c0_i32_0 : i32, i32
  }
  func.func @transform_12(%arg0: i32) -> (i32, i32) {
    %c0_i32 = arith.constant 0 : i32
    %c0_i32_0 = arith.constant 0 : i32
    return %arg0, %c0_i32 : i32, i32
  }
}

</mosaic_0001>

<llo_original>
// kernel: forward.1
$region0: #{forward.1}
  #allocation0 [shape = 'u32[]', space=smem, size = 0x4, offset = 0x4, fixed_abs, tag = 'smem constant byte address 0x4 - core index']
  #allocation1 [shape = 'u32[144,128]{1,0:T(1,128)}', space=vmem, size = 0x12000, scoped, tag = 'internal scratch']
  %s0 = inlined_call_operand.vmem [shape: f32[16,32], index: 0, kind: input, shape index: {}]
  %s1 = inlined_call_operand.vmem [shape: f32[16,16], index: 1, kind: input, shape index: {}]
  %s2 = inlined_call_operand.vmem [shape: f32[16,32], index: 2, kind: input, shape index: {}]
  %s3 = inlined_call_operand.vmem [shape: f32[32,32], index: 3, kind: input, shape index: {}]
  %s4 = inlined_call_operand.vmem [shape: f32[1,32], index: 4, kind: input, shape index: {}, may-alias: {4,7}]
  %s5 = inlined_call_operand.vmem [shape: f32[32,32], index: 5, kind: input, shape index: {}]
  %s6 = inlined_call_operand.vmem [shape: f32[16,32], index: 6, kind: input, shape index: {}]
  %s7 = inlined_call_operand.vmem [shape: f32[1,32], index: 7, kind: input, shape index: {}, may-alias: {4,7}]
  %s8 = inlined_call_operand.vmem [shape: f32[3,32,64], index: 8, kind: input, shape index: {}]
  %s9 = inlined_call_operand.vmem [shape: f32[1,64], index: 9, kind: input, shape index: {}]
  %s10 = inlined_call_operand.vmem [shape: f32[3,32,128], index: 10, kind: input, shape index: {}]
  %s11 = inlined_call_operand.vmem [shape: f32[1,128], index: 11, kind: input, shape index: {}]
  %s12 = inlined_call_operand.vmem [shape: f32[16,128], index: 12, kind: output, shape index: {}]
  %s13 = sld [smem:[#allocation0]]
  $region81: #{forward.1} parent=0
    _
  %s15 = ssub.s32 1, %s13
  %s16 = scalar_select 0, %s15, %s13
  loop: start=0, step=1, limit=4
  $region2: #{forward.1} parent=0 // loop_pre_header
    _
  $region3: #{forward.1} parent=0 // loop_header
    %s18 = sphi 0, %s22
    %p19 = scmp.ge.s32.totalorder %s18, 4
    %s28 = sphi 0, %s30
    %s31 = sphi 0, %s28
    %s32 = sphi 0, %s31
    %s48 = sphi 0, %s32
    %s54 = sphi 0, %s56
    %s57 = sphi 0, %s54
    %s58 = sphi 0, %s57
    %s74 = sphi 0, %s58
    %s80 = sphi 0, %s82
    %s83 = sphi 0, %s80
    %s84 = sphi 0, %s83
    %s100 = sphi 0, %s84
    %s104 = sphi 0, %s104
    %s106 = sphi 0, %s104
    %s107 = sphi 0, %s106
    %s121 = sphi 0, %s107
    %s125 = sphi 0, %s125
    %s127 = sphi 0, %s125
    %s128 = sphi 0, %s127
    %s142 = sphi 0, %s128
    %s146 = sphi 0, %s146
    %s148 = sphi 0, %s146
    %s149 = sphi 0, %s148
    %s163 = sphi 0, %s149
    %s167 = sphi 0, %s167
    %s169 = sphi 0, %s167
    %s170 = sphi 0, %s169
    %s184 = sphi 0, %s170
    %s188 = sphi 0, %s188
    %s190 = sphi 0, %s188
    %s191 = sphi 0, %s190
    %s205 = sphi 0, %s191
    %s209 = sphi 0, %s209
    %s211 = sphi 0, %s209
    %s212 = sphi 0, %s211
    %s226 = sphi 0, %s212
    %s230 = sphi 0, %s230
    %s232 = sphi 0, %s230
    %s233 = sphi 0, %s232
    %s247 = sphi 0, %s233
    %s251 = sphi 0, %s251
    %s253 = sphi 0, %s251
    %s254 = sphi 0, %s253
    %s268 = sphi 0, %s254
    %s272 = sphi 0, %s272
    %s274 = sphi 0, %s272
    %s275 = sphi 0, %s274
    %s289 = sphi 0, %s275
    %s295 = sphi 0, %s297
    %s298 = sphi 0, %s295
    %s299 = sphi 0, %s298
    %s315 = sphi 0, %s299
  $region4: #{forward.1} parent=0 // loop_header_branch
    %21 = sbr.rel (%p19) target = $region8
  $region5: #{forward.1} parent=0 // loop_body
    %s23 = ssub.s32 %s18, 1
    %s24 = ssub.s32 %s18, 2
    %s25 = sadd.s32 %s18, 1
    %s26 = ssub.s32 %s18, %s25
    %p27 = scmp.eq.s32.totalorder %s26, 0
    %s29 = sadd.s32 %s28, 1
    %s30 = scalar_select %p27, %s28, %s29
    %p33 = pneg %p27
    %p34 = scmp.eq.s32.totalorder %s18, 1
    %p35 = por %p33, %p34
    %p36 = scmp.ne.s32.totalorder %s28, %s31
    %p37 = scmp.eq.s32.totalorder %s18, 0
    %p38 = por %p36, %p37
    %p39 = scmp.ne.s32.totalorder %s28, %s31
    %p40 = scmp.eq.s32.totalorder %s23, 1
    %p41 = por %p39, %p40
    %p42 = scmp.ne.s32.totalorder %s31, %s32
    %p43 = scmp.eq.s32.totalorder %s23, 0
    %p44 = por %p42, %p43
    %p45 = scmp.ne.s32.totalorder %s31, %s32
    %p46 = scmp.eq.s32.totalorder %s24, 1
    %p47 = por %p45, %p46
    %p49 = scmp.ne.s32.totalorder %s32, %s48
    %p50 = scmp.eq.s32.totalorder %s24, 0
    %p51 = por %p49, %p50
    %s52 = ssub.s32 %s18, %s25
    %p53 = scmp.eq.s32.totalorder %s52, 0
    %s55 = sadd.s32 %s54, 1
    %s56 = scalar_select %p53, %s54, %s55
    %p59 = pneg %p53
    %p60 = scmp.eq.s32.totalorder %s18, 1
    %p61 = por %p59, %p60
    %p62 = scmp.ne.s32.totalorder %s54, %s57
    %p63 = scmp.eq.s32.totalorder %s18, 0
    %p64 = por %p62, %p63
    %p65 = scmp.ne.s32.totalorder %s54, %s57
    %p66 = scmp.eq.s32.totalorder %s23, 1
    %p67 = por %p65, %p66
    %p68 = scmp.ne.s32.totalorder %s57, %s58
    %p69 = scmp.eq.s32.totalorder %s23, 0
    %p70 = por %p68, %p69
    %p71 = scmp.ne.s32.totalorder %s57, %s58
    %p72 = scmp.eq.s32.totalorder %s24, 1
    %p73 = por %p71, %p72
    %p75 = scmp.ne.s32.totalorder %s58, %s74
    %p76 = scmp.eq.s32.totalorder %s24, 0
    %p77 = por %p75, %p76
    %s78 = ssub.s32 %s18, %s25
    %p79 = scmp.eq.s32.totalorder %s78, 0
    %s81 = sadd.s32 %s80, 1
    %s82 = scalar_select %p79, %s80, %s81
    %p85 = pneg %p79
    %p86 = scmp.eq.s32.totalorder %s18, 1
    %p87 = por %p85, %p86
    %p88 = scmp.ne.s32.totalorder %s80, %s83
    %p89 = scmp.eq.s32.totalorder %s18, 0
    %p90 = por %p88, %p89
    %p91 = scmp.ne.s32.totalorder %s80, %s83
    %p92 = scmp.eq.s32.totalorder %s23, 1
    %p93 = por %p91, %p92
    %p94 = scmp.ne.s32.totalorder %s83, %s84
    %p95 = scmp.eq.s32.totalorder %s23, 0
    %p96 = por %p94, %p95
    %p97 = scmp.ne.s32.totalorder %s83, %s84
    %p98 = scmp.eq.s32.totalorder %s24, 1
    %p99 = por %p97, %p98
    %p101 = scmp.ne.s32.totalorder %s84, %s100
    %p102 = scmp.eq.s32.totalorder %s24, 0
    %p103 = por %p101, %p102
    %s105 = sadd.s32 %s104, 1
    %p108 = scmp.eq.s32.totalorder %s18, 1
    %p109 = scmp.ne.s32.totalorder %s104, %s106
    %p110 = scmp.eq.s32.totalorder %s18, 0
    %p111 = por %p109, %p110
    %p112 = scmp.ne.s32.totalorder %s104, %s106
    %p113 = scmp.eq.s32.totalorder %s23, 1
    %p114 = por %p112, %p113
    %p115 = scmp.ne.s32.totalorder %s106, %s107
    %p116 = scmp.eq.s32.totalorder %s23, 0
    %p117 = por %p115, %p116
    %p118 = scmp.ne.s32.totalorder %s106, %s107
    %p119 = scmp.eq.s32.totalorder %s24, 1
    %p120 = por %p118, %p119
    %p122 = scmp.ne.s32.totalorder %s107, %s121
    %p123 = scmp.eq.s32.totalorder %s24, 0
    %p124 = por %p122, %p123
    %s126 = sadd.s32 %s125, 1
    %p129 = scmp.eq.s32.totalorder %s18, 1
    %p130 = scmp.ne.s32.totalorder %s125, %s127
    %p131 = scmp.eq.s32.totalorder %s18, 0
    %p132 = por %p130, %p131
    %p133 = scmp.ne.s32.totalorder %s125, %s127
    %p134 = scmp.eq.s32.totalorder %s23, 1
    %p135 = por %p133, %p134
    %p136 = scmp.ne.s32.totalorder %s127, %s128
    %p137 = scmp.eq.s32.totalorder %s23, 0
    %p138 = por %p136, %p137
    %p139 = scmp.ne.s32.totalorder %s127, %s128
    %p140 = scmp.eq.s32.totalorder %s24, 1
    %p141 = por %p139, %p140
    %p143 = scmp.ne.s32.totalorder %s128, %s142
    %p144 = scmp.eq.s32.totalorder %s24, 0
    %p145 = por %p143, %p144
    %s147 = sadd.s32 %s146, 1
    %p150 = scmp.eq.s32.totalorder %s18, 1
    %p151 = scmp.ne.s32.totalorder %s146, %s148
    %p152 = scmp.eq.s32.totalorder %s18, 0
    %p153 = por %p151, %p152
    %p154 = scmp.ne.s32.totalorder %s146, %s148
    %p155 = scmp.eq.s32.totalorder %s23, 1
    %p156 = por %p154, %p155
    %p157 = scmp.ne.s32.totalorder %s148, %s149
    %p158 = scmp.eq.s32.totalorder %s23, 0
    %p159 = por %p157, %p158
    %p160 = scmp.ne.s32.totalorder %s148, %s149
    %p161 = scmp.eq.s32.totalorder %s24, 1
    %p162 = por %p160, %p161
    %p164 = scmp.ne.s32.totalorder %s149, %s163
    %p165 = scmp.eq.s32.totalorder %s24, 0
    %p166 = por %p164, %p165
    %s168 = sadd.s32 %s167, 1
    %p171 = scmp.eq.s32.totalorder %s18, 1
    %p172 = scmp.ne.s32.totalorder %s167, %s169
    %p173 = scmp.eq.s32.totalorder %s18, 0
    %p174 = por %p172, %p173
    %p175 = scmp.ne.s32.totalorder %s167, %s169
    %p176 = scmp.eq.s32.totalorder %s23, 1
    %p177 = por %p175, %p176
    %p178 = scmp.ne.s32.totalorder %s169, %s170
    %p179 = scmp.eq.s32.totalorder %s23, 0
    %p180 = por %p178, %p179
    %p181 = scmp.ne.s32.totalorder %s169, %s170
    %p182 = scmp.eq.s32.totalorder %s24, 1
    %p183 = por %p181, %p182
    %p185 = scmp.ne.s32.totalorder %s170, %s184
    %p186 = scmp.eq.s32.totalorder %s24, 0
    %p187 = por %p185, %p186
    %s189 = sadd.s32 %s188, 1
    %p192 = scmp.eq.s32.totalorder %s18, 1
    %p193 = scmp.ne.s32.totalorder %s188, %s190
    %p194 = scmp.eq.s32.totalorder %s18, 0
    %p195 = por %p193, %p194
    %p196 = scmp.ne.s32.totalorder %s188, %s190
    %p197 = scmp.eq.s32.totalorder %s23, 1
    %p198 = por %p196, %p197
    %p199 = scmp.ne.s32.totalorder %s190, %s191
    %p200 = scmp.eq.s32.totalorder %s23, 0
    %p201 = por %p199, %p200
    %p202 = scmp.ne.s32.totalorder %s190, %s191
    %p203 = scmp.eq.s32.totalorder %s24, 1
    %p204 = por %p202, %p203
    %p206 = scmp.ne.s32.totalorder %s191, %s205
    %p207 = scmp.eq.s32.totalorder %s24, 0
    %p208 = por %p206, %p207
    %s210 = sadd.s32 %s209, 1
    %p213 = scmp.eq.s32.totalorder %s18, 1
    %p214 = scmp.ne.s32.totalorder %s209, %s211
    %p215 = scmp.eq.s32.totalorder %s18, 0
    %p216 = por %p214, %p215
    %p217 = scmp.ne.s32.totalorder %s209, %s211
    %p218 = scmp.eq.s32.totalorder %s23, 1
    %p219 = por %p217, %p218
    %p220 = scmp.ne.s32.totalorder %s211, %s212
    %p221 = scmp.eq.s32.totalorder %s23, 0
    %p222 = por %p220, %p221
    %p223 = scmp.ne.s32.totalorder %s211, %s212
    %p224 = scmp.eq.s32.totalorder %s24, 1
    %p225 = por %p223, %p224
    %p227 = scmp.ne.s32.totalorder %s212, %s226
    %p228 = scmp.eq.s32.totalorder %s24, 0
    %p229 = por %p227, %p228
    %s231 = sadd.s32 %s230, 1
    %p234 = scmp.eq.s32.totalorder %s18, 1
    %p235 = scmp.ne.s32.totalorder %s230, %s232
    %p236 = scmp.eq.s32.totalorder %s18, 0
    %p237 = por %p235, %p236
    %p238 = scmp.ne.s32.totalorder %s230, %s232
    %p239 = scmp.eq.s32.totalorder %s23, 1
    %p240 = por %p238, %p239
    %p241 = scmp.ne.s32.totalorder %s232, %s233
    %p242 = scmp.eq.s32.totalorder %s23, 0
    %p243 = por %p241, %p242
    %p244 = scmp.ne.s32.totalorder %s232, %s233
    %p245 = scmp.eq.s32.totalorder %s24, 1
    %p246 = por %p244, %p245
    %p248 = scmp.ne.s32.totalorder %s233, %s247
    %p249 = scmp.eq.s32.totalorder %s24, 0
    %p250 = por %p248, %p249
    %s252 = sadd.s32 %s251, 1
    %p255 = scmp.eq.s32.totalorder %s18, 1
    %p256 = scmp.ne.s32.totalorder %s251, %s253
    %p257 = scmp.eq.s32.totalorder %s18, 0
    %p258 = por %p256, %p257
    %p259 = scmp.ne.s32.totalorder %s251, %s253
    %p260 = scmp.eq.s32.totalorder %s23, 1
    %p261 = por %p259, %p260
    %p262 = scmp.ne.s32.totalorder %s253, %s254
    %p263 = scmp.eq.s32.totalorder %s23, 0
    %p264 = por %p262, %p263
    %p265 = scmp.ne.s32.totalorder %s253, %s254
    %p266 = scmp.eq.s32.totalorder %s24, 1
    %p267 = por %p265, %p266
    %p269 = scmp.ne.s32.totalorder %s254, %s268
    %p270 = scmp.eq.s32.totalorder %s24, 0
    %p271 = por %p269, %p270
    %s273 = sadd.s32 %s272, 1
    %p276 = scmp.eq.s32.totalorder %s18, 1
    %p277 = scmp.ne.s32.totalorder %s272, %s274
    %p278 = scmp.eq.s32.totalorder %s18, 0
    %p279 = por %p277, %p278
    %p280 = scmp.ne.s32.totalorder %s272, %s274
    %p281 = scmp.eq.s32.totalorder %s23, 1
    %p282 = por %p280, %p281
    %p283 = scmp.ne.s32.totalorder %s274, %s275
    %p284 = scmp.eq.s32.totalorder %s23, 0
    %p285 = por %p283, %p284
    %p286 = scmp.ne.s32.totalorder %s274, %s275
    %p287 = scmp.eq.s32.totalorder %s24, 1
    %p288 = por %p286, %p287
    %p290 = scmp.ne.s32.totalorder %s275, %s289
    %p291 = scmp.eq.s32.totalorder %s24, 0
    %p292 = por %p290, %p291
    %s293 = ssub.s32 %s18, %s25
    %p294 = scmp.eq.s32.totalorder %s293, 0
    %s296 = sadd.s32 %s295, 1
    %s297 = scalar_select %p294, %s295, %s296
    %p300 = pneg %p294
    %p301 = scmp.eq.s32.totalorder %s18, 1
    %p302 = por %p300, %p301
    %p303 = scmp.ne.s32.totalorder %s295, %s298
    %p304 = scmp.eq.s32.totalorder %s18, 0
    %p305 = por %p303, %p304
    %p306 = scmp.ne.s32.totalorder %s295, %s298
    %p307 = scmp.eq.s32.totalorder %s23, 1
    %p308 = por %p306, %p307
    %p309 = scmp.ne.s32.totalorder %s298, %s299
    %p310 = scmp.eq.s32.totalorder %s23, 0
    %p311 = por %p309, %p310
    %p312 = scmp.ne.s32.totalorder %s298, %s299
    %p313 = scmp.eq.s32.totalorder %s24, 1
    %p314 = por %p312, %p313
    %p316 = scmp.ne.s32.totalorder %s299, %s315
    %p317 = scmp.eq.s32.totalorder %s24, 0
    %p318 = por %p316, %p317
    %p319 = scmp.le.s32.totalorder 1, %s18
    %p320 = scmp.lt.s32.totalorder %s18, 3
    %p321 = pnand %p319, %p320
    %p322 = pneg %p321
    // Predicated region
    $region9: #{forward.1} parent=5 // pred_check
      _
    $region10: #{forward.1} parent=5 // pred_check_branch
      %324 = sbr.rel (%p321) target = $region12
    $region11: #{forward.1} parent=5 // pred_region
      %s325 = ssub.s32 %s18, 1
      // Predicated region
      $region13: #{forward.1} parent=11 // pred_check
        %p326 = pneg %p117
      $region14: #{forward.1} parent=11 // pred_check_branch
        %328 = sbr.rel (%p326) target = $region16
      $region15: #{forward.1} parent=11 // pred_region
        _
      $region16: #{forward.1} parent=11 // pred_fallthru
        _
      // Predicated region
      $region17: #{forward.1} parent=11 // pred_check
        %p329 = pneg %p138
      $region18: #{forward.1} parent=11 // pred_check_branch
        %331 = sbr.rel (%p329) target = $region20
      $region19: #{forward.1} parent=11 // pred_region
        _
      $region20: #{forward.1} parent=11 // pred_fallthru
        _
      // Predicated region
      $region21: #{forward.1} parent=11 // pred_check
        %p332 = pneg %p159
      $region22: #{forward.1} parent=11 // pred_check_branch
        %334 = sbr.rel (%p332) target = $region24
      $region23: #{forward.1} parent=11 // pred_region
        _
      $region24: #{forward.1} parent=11 // pred_fallthru
        _
      // Predicated region
      $region25: #{forward.1} parent=11 // pred_check
        %p335 = pneg %p180
      $region26: #{forward.1} parent=11 // pred_check_branch
        %337 = sbr.rel (%p335) target = $region28
      $region27: #{forward.1} parent=11 // pred_region
        _
      $region28: #{forward.1} parent=11 // pred_fallthru
        _
      // Predicated region
      $region29: #{forward.1} parent=11 // pred_check
        %p338 = pneg %p201
      $region30: #{forward.1} parent=11 // pred_check_branch
        %340 = sbr.rel (%p338) target = $region32
      $region31: #{forward.1} parent=11 // pred_region
        _
      $region32: #{forward.1} parent=11 // pred_fallthru
        _
      // Predicated region
      $region33: #{forward.1} parent=11 // pred_check
        %p341 = pneg %p222
      $region34: #{forward.1} parent=11 // pred_check_branch
        %343 = sbr.rel (%p341) target = $region36
      $region35: #{forward.1} parent=11 // pred_region
        _
      $region36: #{forward.1} parent=11 // pred_fallthru
        _
      // Predicated region
      $region37: #{forward.1} parent=11 // pred_check
        %p344 = pneg %p243
      $region38: #{forward.1} parent=11 // pred_check_branch
        %346 = sbr.rel (%p344) target = $region40
      $region39: #{forward.1} parent=11 // pred_region
        _
      $region40: #{forward.1} parent=11 // pred_fallthru
        _
      // Predicated region
      $region41: #{forward.1} parent=11 // pred_check
        %p347 = pneg %p264
      $region42: #{forward.1} parent=11 // pred_check_branch
        %349 = sbr.rel (%p347) target = $region44
      $region43: #{forward.1} parent=11 // pred_region
        _
      $region44: #{forward.1} parent=11 // pred_fallthru
        _
      // Predicated region
      $region45: #{forward.1} parent=11 // pred_check
        %p350 = pneg %p285
      $region46: #{forward.1} parent=11 // pred_check_branch
        %352 = sbr.rel (%p350) target = $region48
      $region47: #{forward.1} parent=11 // pred_region
        _
      $region48: #{forward.1} parent=11 // pred_fallthru
        _
    $region12: #{forward.1} parent=5 // pred_fallthru
      _
    %p353 = scmp.lt.s32.totalorder %s18, 2
    // Predicated region
    $region49: #{forward.1} parent=5 // pred_check
      %p354 = pneg %p353
    $region50: #{forward.1} parent=5 // pred_check_branch
      %356 = sbr.rel (%p354) target = $region52
    $region51: #{forward.1} parent=5 // pred_region
      // Predicated region
      $region53: #{forward.1} parent=51 // pred_check
        %p357 = pneg %p38
      $region54: #{forward.1} parent=51 // pred_check_branch
        %359 = sbr.rel (%p357) target = $region56
      $region55: #{forward.1} parent=51 // pred_region
        %p360 = scmp.lt.s32.totalorder %s18, 1
        %s361 = scalar_select %p360, %s18, 1
        %s362 = smul.addr %s361, 8
        %s363 = scalar_lea.vmem %s0, %s362
      $region56: #{forward.1} parent=51 // pred_fallthru
        _
      // Predicated region
      $region57: #{forward.1} parent=51 // pred_check
        %p364 = pneg %p64
      $region58: #{forward.1} parent=51 // pred_check_branch
        %366 = sbr.rel (%p364) target = $region60
      $region59: #{forward.1} parent=51 // pred_region
        %p367 = scmp.lt.s32.totalorder %s18, 1
        %s368 = scalar_select %p367, %s18, 1
        %s369 = smul.addr %s368, 8
        %s370 = scalar_lea.vmem %s1, %s369
      $region60: #{forward.1} parent=51 // pred_fallthru
        _
      // Predicated region
      $region61: #{forward.1} parent=51 // pred_check
        %p371 = pneg %p90
      $region62: #{forward.1} parent=51 // pred_check_branch
        %373 = sbr.rel (%p371) target = $region64
      $region63: #{forward.1} parent=51 // pred_region
        %p374 = scmp.lt.s32.totalorder %s18, 1
        %s375 = scalar_select %p374, %s18, 1
        %s376 = smul.addr %s375, 8
        %s377 = scalar_lea.vmem %s2, %s376
      $region64: #{forward.1} parent=51 // pred_fallthru
        _
    $region52: #{forward.1} parent=5 // pred_fallthru
      _
    %p378 = scmp.le.s32.totalorder 1, %s18
    %p379 = scmp.lt.s32.totalorder %s18, 3
    %p380 = pnand %p378, %p379
    %p381 = pneg %p380
    // Predicated region
    $region65: #{forward.1} parent=5 // pred_check
      _
    $region66: #{forward.1} parent=5 // pred_check_branch
      %383 = sbr.rel (%p380) target = $region68
    $region67: #{forward.1} parent=5 // pred_region
      %s384 = ssub.s32 %s18, 1
      %p385 = scmp.lt.s32.totalorder %s23, 1
      %s386 = scalar_select %p385, %s23, 1
      %s387 = smul.addr %s386, 8
      %s388 = scalar_lea.vmem %s0, %s387
      %p389 = pneg %p44
      %p390 = pneg %p41
      %p391 = scmp.lt.s32.totalorder %s23, 1
      %s392 = scalar_select %p391, %s23, 1
      %s393 = smul.addr %s392, 8
      %s394 = scalar_lea.vmem %s1, %s393
      %p395 = pneg %p70
      %p396 = pneg %p67
      %p397 = scmp.lt.s32.totalorder %s23, 1
      %s398 = scalar_select %p397, %s23, 1
      %s399 = smul.addr %s398, 8
      %s400 = scalar_lea.vmem %s2, %s399
      %p401 = pneg %p96
      %p402 = pneg %p93
      %p403 = pneg %p117
      %p404 = pneg %p114
      %p405 = pneg %p138
      %p406 = pneg %p135
      %p407 = pneg %p159
      %p408 = pneg %p156
      %p409 = pneg %p180
      %p410 = pneg %p177
      %p411 = pneg %p201
      %p412 = pneg %p198
      %p413 = pneg %p222
      %p414 = pneg %p219
      %p415 = pneg %p243
      %p416 = pneg %p240
      %p417 = pneg %p264
      %p418 = pneg %p261
      %p419 = pneg %p285
      %p420 = pneg %p282
      %p421 = pneg %p311
      %p422 = pneg %p308
      %p423 = scmp.lt.s32.totalorder %s23, 1
      %s424 = scalar_select %p423, %s23, 1
      %s425 = smul.addr %s424, 8
      %s426 = scalar_lea.vmem %s12, %s425
      %p427 = scmp.lt.s32.totalorder %s23, 1
      %s428 = scalar_select %p427, %s23, 1
      %s429 = smul.addr %s428, 8
      %s430 = scalar_lea.vmem %s0, %s429
      %p431 = scmp.lt.s32.totalorder %s23, 1
      %s432 = scalar_select %p431, %s23, 1
      %s433 = smul.addr %s432, 8
      %s434 = scalar_lea.vmem %s1, %s433
      %p435 = scmp.lt.s32.totalorder %s23, 1
      %s436 = scalar_select %p435, %s23, 1
      %s437 = smul.addr %s436, 8
      %s438 = scalar_lea.vmem %s2, %s437
      %p439 = scmp.lt.s32.totalorder %s23, 1
      %s440 = scalar_select %p439, %s23, 1
      %s441 = smul.addr %s440, 8
      %s442 = scalar_lea.vmem %s12, %s441
      %v443 = vld [vmem:[%s430] sm:$0xff]
      %v444 = vld [vmem:[%s3] sm:$0xff]
      %v445 = vld [vmem:[%s3 + $0x8] sm:$0xff]
      %v446 = vld [vmem:[%s3 + $0x10] sm:$0xff]
      %v447 = vld [vmem:[%s3 + $0x18] sm:$0xff]
      %v448 = vld [vmem:[%s4] sm:$0x1]
      %v450 = vlaneseq
      %v451 = vshrl.u32 %v450, 7
      %v452 = vsub.s32 0, %v451
      %v453 = vrot.slane %v448, %v452
      %vm455 = vcmask 261120
      %v457 = vsel %vm455, %v443, 0
      %459 = vmatprep.subr.mxu0 0.0
      %460 = vmatpush1.msra.mxu0 0.0
      %461 = vmatprep.subr.mxu0 0.0
      %462 = vmatpush1.msra.mxu0 0.0
      %463 = vmatprep.subr.mxu0 0.0
      %464 = vmatpush1.msra.mxu0 0.0
      %465 = vmatprep.subr.mxu0 0.0
      %466 = vmatpush1.msra.mxu0 0.0
      %467 = vmatprep.subr.mxu0 0.0
      %468 = vmatpush1.msra.mxu0 0.0
      %469 = vmatprep.subr.mxu0 0.0
      %470 = vmatpush1.msra.mxu0 0.0
      %471 = vmatprep.subr.mxu0 0.0
      %472 = vmatpush1.msra.mxu0 0.0
      %473 = vmatprep.subr.mxu0 0.0
      %474 = vmatpush1.msra.mxu0 0.0
      %475 = vmatprep.subr.mxu0 0.0
      %476 = vmatpush1.msra.mxu0 0.0
      %477 = vmatprep.subr.mxu0 0.0
      %478 = vmatpush1.msra.mxu0 0.0
      %479 = vmatprep.subr.mxu0 0.0
      %480 = vmatpush1.msra.mxu0 0.0
      %481 = vmatprep.subr.mxu0 0.0
      %482 = vmatpush1.msra.mxu0 0.0
      %483 = vmatprep.subr.mxu0 0.0
      %484 = vmatpush1.msra.mxu0 %v447
      %485 = vmatprep.subr.mxu0 0.0
      %486 = vmatpush1.msra.mxu0 %v446
      %487 = vmatprep.subr.mxu0 0.0
      %488 = vmatpush1.msra.mxu0 %v445
      %489 = vmatprep.subr.mxu0 0.0
      %490 = vmatpush1.msra.mxu0 %v444
      %491 = vmatprep.subr.mxu0 0.0
      %492 = vmatpush2.msra.mxu0 0.0
      %493 = vmatprep.subr.mxu0 0.0
      %494 = vmatpush2.msra.mxu0 0.0
      %495 = vmatprep.subr.mxu0 0.0
      %496 = vmatpush2.msra.mxu0 0.0
      %497 = vmatprep.subr.mxu0 0.0
      %498 = vmatpush2.msra.mxu0 0.0
      %499 = vmatprep.subr.mxu0 0.0
      %500 = vmatpush2.msra.mxu0 0.0
      %501 = vmatprep.subr.mxu0 0.0
      %502 = vmatpush2.msra.mxu0 0.0
      %503 = vmatprep.subr.mxu0 0.0
      %504 = vmatpush2.msra.mxu0 0.0
      %505 = vmatprep.subr.mxu0 0.0
      %506 = vmatpush2.msra.mxu0 0.0
      %507 = vmatprep.subr.mxu0 0.0
      %508 = vmatpush2.msra.mxu0 0.0
      %509 = vmatprep.subr.mxu0 0.0
      %510 = vmatpush2.msra.mxu0 0.0
      %511 = vmatprep.subr.mxu0 0.0
      %512 = vmatpush2.msra.mxu0 0.0
      %513 = vmatprep.subr.mxu0 0.0
      %514 = vmatpush2.msra.mxu0 0.0
      %515 = vmatprep.subr.mxu0 0.0
      %516 = vmatpush2.msra.mxu0 0.0
      %517 = vmatprep.subr.mxu0 0.0
      %518 = vmatpush2.msra.mxu0 0.0
      %519 = vmatprep.subr.mxu0 0.0
      %520 = vmatpush2.msra.mxu0 0.0
      %521 = vmatprep.subr.mxu0 0.0
      %522 = vmatpush2.msra.mxu0 0.0
      %523 = vmatprep.mubr.f32.mxu0 0.0
      %524 = vmatmul.mubr.f32.gmra.mxu0 %v457
      %v525 = vpop.f32.mrf.mxu0
      %v526 = vadd.f32 %v453, %v525
      %v527 = vpop.f32.mrf.mxu0
      %528 = vdwg.mxu0
      %v529 = vtanh.pop %v526
      %v530 = vld [vmem:[%s5] sm:$0xff]
      %v531 = vld [vmem:[%s5 + $0x8] sm:$0xff]
      %v532 = vld [vmem:[%s5 + $0x10] sm:$0xff]
      %v533 = vld [vmem:[%s5 + $0x18] sm:$0xff]
      %v534 = vld [vmem:[%s434] sm:$0xff]
      %v535 = vld [vmem:[%s6] sm:$0xff]
      %v536 = vld [vmem:[%s6 + $0x8] sm:$0xff]
      %vm537 = vcmask 130048
      %v539 = vsel %vm537, %v534, 0
      %541 = vmatprep.subr.mxu0 0.0
      %542 = vmatpush1.msra.mxu0 0.0
      %543 = vmatprep.subr.mxu0 0.0
      %544 = vmatpush1.msra.mxu0 0.0
      %545 = vmatprep.subr.mxu0 0.0
      %546 = vmatpush1.msra.mxu0 0.0
      %547 = vmatprep.subr.mxu0 0.0
      %548 = vmatpush1.msra.mxu0 0.0
      %549 = vmatprep.subr.mxu0 0.0
      %550 = vmatpush1.msra.mxu0 0.0
      %551 = vmatprep.subr.mxu0 0.0
      %552 = vmatpush1.msra.mxu0 0.0
      %553 = vmatprep.subr.mxu0 0.0
      %554 = vmatpush1.msra.mxu0 0.0
      %555 = vmatprep.subr.mxu0 0.0
      %556 = vmatpush1.msra.mxu0 0.0
      %557 = vmatprep.subr.mxu0 0.0
      %558 = vmatpush1.msra.mxu0 0.0
      %559 = vmatprep.subr.mxu0 0.0
      %560 = vmatpush1.msra.mxu0 0.0
      %561 = vmatprep.subr.mxu0 0.0
      %562 = vmatpush1.msra.mxu0 0.0
      %563 = vmatprep.subr.mxu0 0.0
      %564 = vmatpush1.msra.mxu0 0.0
      %565 = vmatprep.subr.mxu0 0.0
      %566 = vmatpush1.msra.mxu0 0.0
      %567 = vmatprep.subr.mxu0 0.0
      %568 = vmatpush1.msra.mxu0 0.0
      %569 = vmatprep.subr.mxu0 0.0
      %570 = vmatpush1.msra.mxu0 %v536
      %571 = vmatprep.subr.mxu0 0.0
      %572 = vmatpush1.msra.mxu0 %v535
      %573 = vmatprep.subr.mxu0 0.0
      %574 = vmatpush2.msra.mxu0 0.0
      %575 = vmatprep.subr.mxu0 0.0
      %576 = vmatpush2.msra.mxu0 0.0
      %577 = vmatprep.subr.mxu0 0.0
      %578 = vmatpush2.msra.mxu0 0.0
      %579 = vmatprep.subr.mxu0 0.0
      %580 = vmatpush2.msra.mxu0 0.0
      %581 = vmatprep.subr.mxu0 0.0
      %582 = vmatpush2.msra.mxu0 0.0
      %583 = vmatprep.subr.mxu0 0.0
      %584 = vmatpush2.msra.mxu0 0.0
      %585 = vmatprep.subr.mxu0 0.0
      %586 = vmatpush2.msra.mxu0 0.0
      %587 = vmatprep.subr.mxu0 0.0
      %588 = vmatpush2.msra.mxu0 0.0
      %589 = vmatprep.subr.mxu0 0.0
      %590 = vmatpush2.msra.mxu0 0.0
      %591 = vmatprep.subr.mxu0 0.0
      %592 = vmatpush2.msra.mxu0 0.0
      %593 = vmatprep.subr.mxu0 0.0
      %594 = vmatpush2.msra.mxu0 0.0
      %595 = vmatprep.subr.mxu0 0.0
      %596 = vmatpush2.msra.mxu0 0.0
      %597 = vmatprep.subr.mxu0 0.0
      %598 = vmatpush2.msra.mxu0 0.0
      %599 = vmatprep.subr.mxu0 0.0
      %600 = vmatpush2.msra.mxu0 0.0
      %601 = vmatprep.subr.mxu0 0.0
      %602 = vmatpush2.msra.mxu0 0.0
      %603 = vmatprep.subr.mxu0 0.0
      %604 = vmatpush2.msra.mxu0 0.0
      %605 = vmatprep.mubr.f32.mxu0 0.0
      %606 = vmatmul.mubr.f32.gmra.mxu0 %v539
      %v607 = vpop.f32.mrf.mxu0
      %v608 = vadd.f32 0.0, %v607
      %v609 = vpop.f32.mrf.mxu0
      %610 = vdwg.mxu0
      %v612 = vsel %vm455, %v529, 0
      %614 = vmatprep.subr.mxu0 0.0
      %615 = vmatpush1.msra.mxu0 0.0
      %616 = vmatprep.subr.mxu0 0.0
      %617 = vmatpush1.msra.mxu0 0.0
      %618 = vmatprep.subr.mxu0 0.0
      %619 = vmatpush1.msra.mxu0 0.0
      %620 = vmatprep.subr.mxu0 0.0
      %621 = vmatpush1.msra.mxu0 0.0
      %622 = vmatprep.subr.mxu0 0.0
      %623 = vmatpush1.msra.mxu0 0.0
      %624 = vmatprep.subr.mxu0 0.0
      %625 = vmatpush1.msra.mxu0 0.0
      %626 = vmatprep.subr.mxu0 0.0
      %627 = vmatpush1.msra.mxu0 0.0
      %628 = vmatprep.subr.mxu0 0.0
      %629 = vmatpush1.msra.mxu0 0.0
      %630 = vmatprep.subr.mxu0 0.0
      %631 = vmatpush1.msra.mxu0 0.0
      %632 = vmatprep.subr.mxu0 0.0
      %633 = vmatpush1.msra.mxu0 0.0
      %634 = vmatprep.subr.mxu0 0.0
      %635 = vmatpush1.msra.mxu0 0.0
      %636 = vmatprep.subr.mxu0 0.0
      %637 = vmatpush1.msra.mxu0 0.0
      %638 = vmatprep.subr.mxu0 0.0
      %639 = vmatpush1.msra.mxu0 %v533
      %640 = vmatprep.subr.mxu0 0.0
      %641 = vmatpush1.msra.mxu0 %v532
      %642 = vmatprep.subr.mxu0 0.0
      %643 = vmatpush1.msra.mxu0 %v531
      %644 = vmatprep.subr.mxu0 0.0
      %645 = vmatpush1.msra.mxu0 %v530
      %646 = vmatprep.subr.mxu0 0.0
      %647 = vmatpush2.msra.mxu0 0.0
      %648 = vmatprep.subr.mxu0 0.0
      %649 = vmatpush2.msra.mxu0 0.0
      %650 = vmatprep.subr.mxu0 0.0
      %651 = vmatpush2.msra.mxu0 0.0
      %652 = vmatprep.subr.mxu0 0.0
      %653 = vmatpush2.msra.mxu0 0.0
      %654 = vmatprep.subr.mxu0 0.0
      %655 = vmatpush2.msra.mxu0 0.0
      %656 = vmatprep.subr.mxu0 0.0
      %657 = vmatpush2.msra.mxu0 0.0
      %658 = vmatprep.subr.mxu0 0.0
      %659 = vmatpush2.msra.mxu0 0.0
      %660 = vmatprep.subr.mxu0 0.0
      %661 = vmatpush2.msra.mxu0 0.0
      %662 = vmatprep.subr.mxu0 0.0
      %663 = vmatpush2.msra.mxu0 0.0
      %664 = vmatprep.subr.mxu0 0.0
      %665 = vmatpush2.msra.mxu0 0.0
      %666 = vmatprep.subr.mxu0 0.0
      %667 = vmatpush2.msra.mxu0 0.0
      %668 = vmatprep.subr.mxu0 0.0
      %669 = vmatpush2.msra.mxu0 0.0
      %670 = vmatprep.subr.mxu0 0.0
      %671 = vmatpush2.msra.mxu0 0.0
      %672 = vmatprep.subr.mxu0 0.0
      %673 = vmatpush2.msra.mxu0 0.0
      %674 = vmatprep.subr.mxu0 0.0
      %675 = vmatpush2.msra.mxu0 0.0
      %676 = vmatprep.subr.mxu0 0.0
      %677 = vmatpush2.msra.mxu0 0.0
      %678 = vmatprep.mubr.f32.mxu0 0.0
      %679 = vmatmul.mubr.f32.gmra.mxu0 %v612
      %v680 = vpop.f32.mrf.mxu0
      %v681 = vadd.f32 %v608, %v680
      %v682 = vpop.f32.mrf.mxu0
      %683 = vdwg.mxu0
      %v684 = vld [vmem:[%s7] sm:$0x1]
      %v686 = vlaneseq
      %v687 = vshrl.u32 %v686, 7
      %v688 = vsub.s32 0, %v687
      %v689 = vrot.slane %v684, %v688
      %v691 = vadd.f32 %v681, %v689
      %v692 = vlaneseq
      %v693 = vshrl.u32 %v692, 7
      %vm694 = vcmp.eq.s32.totalorder %v693, 0
      %vm695 = vcmp.eq.s32.totalorder %v693, 7
      %v696 = vld [vmem:[%s9] sm:$0x1]
      %v697 = vrot.slane %v691, 7
      %v698 = vsel %vm694, 0.0, %v697
      %v699 = vrot.slane %v691, 1
      %v700 = vsel %vm695, 0.0, %v699
      %v701 = vld [vmem:[%s8] sm:$0xff]
      %v702 = vld [vmem:[%s8 + $0x8] sm:$0xff]
      %v703 = vld [vmem:[%s8 + $0x10] sm:$0xff]
      %v704 = vld [vmem:[%s8 + $0x18] sm:$0xff]
      %s705 = scalar_lea.vmem %s8, 32
      %v706 = vld [vmem:[%s705] sm:$0xff]
      %v707 = vld [vmem:[%s705 + $0x8] sm:$0xff]
      %v708 = vld [vmem:[%s705 + $0x10] sm:$0xff]
      %v709 = vld [vmem:[%s705 + $0x18] sm:$0xff]
      %v711 = vsel %vm455, %v691, 0
      %713 = vmatprep.subr.mxu0 0.0
      %714 = vmatpush1.msra.mxu0 0.0
      %715 = vmatprep.subr.mxu0 0.0
      %716 = vmatpush1.msra.mxu0 0.0
      %717 = vmatprep.subr.mxu0 0.0
      %718 = vmatpush1.msra.mxu0 0.0
      %719 = vmatprep.subr.mxu0 0.0
      %720 = vmatpush1.msra.mxu0 0.0
      %721 = vmatprep.subr.mxu0 0.0
      %722 = vmatpush1.msra.mxu0 0.0
      %723 = vmatprep.subr.mxu0 0.0
      %724 = vmatpush1.msra.mxu0 0.0
      %725 = vmatprep.subr.mxu0 0.0
      %726 = vmatpush1.msra.mxu0 0.0
      %727 = vmatprep.subr.mxu0 0.0
      %728 = vmatpush1.msra.mxu0 0.0
      %729 = vmatprep.subr.mxu0 0.0
      %730 = vmatpush1.msra.mxu0 0.0
      %731 = vmatprep.subr.mxu0 0.0
      %732 = vmatpush1.msra.mxu0 0.0
      %733 = vmatprep.subr.mxu0 0.0
      %734 = vmatpush1.msra.mxu0 0.0
      %735 = vmatprep.subr.mxu0 0.0
      %736 = vmatpush1.msra.mxu0 0.0
      %737 = vmatprep.subr.mxu0 0.0
      %738 = vmatpush1.msra.mxu0 %v709
      %739 = vmatprep.subr.mxu0 0.0
      %740 = vmatpush1.msra.mxu0 %v708
      %741 = vmatprep.subr.mxu0 0.0
      %742 = vmatpush1.msra.mxu0 %v707
      %743 = vmatprep.subr.mxu0 0.0
      %744 = vmatpush1.msra.mxu0 %v706
      %745 = vmatprep.subr.mxu0 0.0
      %746 = vmatpush2.msra.mxu0 0.0
      %747 = vmatprep.subr.mxu0 0.0
      %748 = vmatpush2.msra.mxu0 0.0
      %749 = vmatprep.subr.mxu0 0.0
      %750 = vmatpush2.msra.mxu0 0.0
      %751 = vmatprep.subr.mxu0 0.0
      %752 = vmatpush2.msra.mxu0 0.0
      %753 = vmatprep.subr.mxu0 0.0
      %754 = vmatpush2.msra.mxu0 0.0
      %755 = vmatprep.subr.mxu0 0.0
      %756 = vmatpush2.msra.mxu0 0.0
      %757 = vmatprep.subr.mxu0 0.0
      %758 = vmatpush2.msra.mxu0 0.0
      %759 = vmatprep.subr.mxu0 0.0
      %760 = vmatpush2.msra.mxu0 0.0
      %761 = vmatprep.subr.mxu0 0.0
      %762 = vmatpush2.msra.mxu0 0.0
      %763 = vmatprep.subr.mxu0 0.0
      %764 = vmatpush2.msra.mxu0 0.0
      %765 = vmatprep.subr.mxu0 0.0
      %766 = vmatpush2.msra.mxu0 0.0
      %767 = vmatprep.subr.mxu0 0.0
      %768 = vmatpush2.msra.mxu0 0.0
      %769 = vmatprep.subr.mxu0 0.0
      %770 = vmatpush2.msra.mxu0 0.0
      %771 = vmatprep.subr.mxu0 0.0
      %772 = vmatpush2.msra.mxu0 0.0
      %773 = vmatprep.subr.mxu0 0.0
      %774 = vmatpush2.msra.mxu0 0.0
      %775 = vmatprep.subr.mxu0 0.0
      %776 = vmatpush2.msra.mxu0 0.0
      %777 = vmatprep.mubr.f32.mxu0 0.0
      %778 = vmatmul.mubr.f32.gmra.mxu0 %v711
      %v779 = vpop.f32.mrf.mxu0
      %v780 = vadd.f32 0.0, %v779
      %v781 = vpop.f32.mrf.mxu0
      %782 = vdwg.mxu0
      %v784 = vsel %vm455, %v698, 0
      %786 = vmatprep.subr.mxu0 0.0
      %787 = vmatpush1.msra.mxu0 0.0
      %788 = vmatprep.subr.mxu0 0.0
      %789 = vmatpush1.msra.mxu0 0.0
      %790 = vmatprep.subr.mxu0 0.0
      %791 = vmatpush1.msra.mxu0 0.0
      %792 = vmatprep.subr.mxu0 0.0
      %793 = vmatpush1.msra.mxu0 0.0
      %794 = vmatprep.subr.mxu0 0.0
      %795 = vmatpush1.msra.mxu0 0.0
      %796 = vmatprep.subr.mxu0 0.0
      %797 = vmatpush1.msra.mxu0 0.0
      %798 = vmatprep.subr.mxu0 0.0
      %799 = vmatpush1.msra.mxu0 0.0
      %800 = vmatprep.subr.mxu0 0.0
      %801 = vmatpush1.msra.mxu0 0.0
      %802 = vmatprep.subr.mxu0 0.0
      %803 = vmatpush1.msra.mxu0 0.0
      %804 = vmatprep.subr.mxu0 0.0
      %805 = vmatpush1.msra.mxu0 0.0
      %806 = vmatprep.subr.mxu0 0.0
      %807 = vmatpush1.msra.mxu0 0.0
      %808 = vmatprep.subr.mxu0 0.0
      %809 = vmatpush1.msra.mxu0 0.0
      %810 = vmatprep.subr.mxu0 0.0
      %811 = vmatpush1.msra.mxu0 %v704
      %812 = vmatprep.subr.mxu0 0.0
      %813 = vmatpush1.msra.mxu0 %v703
      %814 = vmatprep.subr.mxu0 0.0
      %815 = vmatpush1.msra.mxu0 %v702
      %816 = vmatprep.subr.mxu0 0.0
      %817 = vmatpush1.msra.mxu0 %v701
      %818 = vmatprep.subr.mxu0 0.0
      %819 = vmatpush2.msra.mxu0 0.0
      %820 = vmatprep.subr.mxu0 0.0
      %821 = vmatpush2.msra.mxu0 0.0
      %822 = vmatprep.subr.mxu0 0.0
      %823 = vmatpush2.msra.mxu0 0.0
      %824 = vmatprep.subr.mxu0 0.0
      %825 = vmatpush2.msra.mxu0 0.0
      %826 = vmatprep.subr.mxu0 0.0
      %827 = vmatpush2.msra.mxu0 0.0
      %828 = vmatprep.subr.mxu0 0.0
      %829 = vmatpush2.msra.mxu0 0.0
      %830 = vmatprep.subr.mxu0 0.0
      %831 = vmatpush2.msra.mxu0 0.0
      %832 = vmatprep.subr.mxu0 0.0
      %833 = vmatpush2.msra.mxu0 0.0
      %834 = vmatprep.subr.mxu0 0.0
      %835 = vmatpush2.msra.mxu0 0.0
      %836 = vmatprep.subr.mxu0 0.0
      %837 = vmatpush2.msra.mxu0 0.0
      %838 = vmatprep.subr.mxu0 0.0
      %839 = vmatpush2.msra.mxu0 0.0
      %840 = vmatprep.subr.mxu0 0.0
      %841 = vmatpush2.msra.mxu0 0.0
      %842 = vmatprep.subr.mxu0 0.0
      %843 = vmatpush2.msra.mxu0 0.0
      %844 = vmatprep.subr.mxu0 0.0
      %845 = vmatpush2.msra.mxu0 0.0
      %846 = vmatprep.subr.mxu0 0.0
      %847 = vmatpush2.msra.mxu0 0.0
      %848 = vmatprep.subr.mxu0 0.0
      %849 = vmatpush2.msra.mxu0 0.0
      %850 = vmatprep.mubr.f32.mxu0 0.0
      %851 = vmatmul.mubr.f32.gmra.mxu0 %v784
      %v852 = vpop.f32.mrf.mxu0
      %v853 = vadd.f32 %v780, %v852
      %v854 = vpop.f32.mrf.mxu0
      %855 = vdwg.mxu0
      %s856 = scalar_lea.vmem %s8, 64
      %v857 = vld [vmem:[%s856] sm:$0xff]
      %v858 = vld [vmem:[%s856 + $0x8] sm:$0xff]
      %v859 = vld [vmem:[%s856 + $0x10] sm:$0xff]
      %v860 = vld [vmem:[%s856 + $0x18] sm:$0xff]
      %v862 = vsel %vm455, %v700, 0
      %864 = vmatprep.subr.mxu0 0.0
      %865 = vmatpush1.msra.mxu0 0.0
      %866 = vmatprep.subr.mxu0 0.0
      %867 = vmatpush1.msra.mxu0 0.0
      %868 = vmatprep.subr.mxu0 0.0
      %869 = vmatpush1.msra.mxu0 0.0
      %870 = vmatprep.subr.mxu0 0.0
      %871 = vmatpush1.msra.mxu0 0.0
      %872 = vmatprep.subr.mxu0 0.0
      %873 = vmatpush1.msra.mxu0 0.0
      %874 = vmatprep.subr.mxu0 0.0
      %875 = vmatpush1.msra.mxu0 0.0
      %876 = vmatprep.subr.mxu0 0.0
      %877 = vmatpush1.msra.mxu0 0.0
      %878 = vmatprep.subr.mxu0 0.0
      %879 = vmatpush1.msra.mxu0 0.0
      %880 = vmatprep.subr.mxu0 0.0
      %881 = vmatpush1.msra.mxu0 0.0
      %882 = vmatprep.subr.mxu0 0.0
      %883 = vmatpush1.msra.mxu0 0.0
      %884 = vmatprep.subr.mxu0 0.0
      %885 = vmatpush1.msra.mxu0 0.0
      %886 = vmatprep.subr.mxu0 0.0
      %887 = vmatpush1.msra.mxu0 0.0
      %888 = vmatprep.subr.mxu0 0.0
      %889 = vmatpush1.msra.mxu0 %v860
      %890 = vmatprep.subr.mxu0 0.0
      %891 = vmatpush1.msra.mxu0 %v859
      %892 = vmatprep.subr.mxu0 0.0
      %893 = vmatpush1.msra.mxu0 %v858
      %894 = vmatprep.subr.mxu0 0.0
      %895 = vmatpush1.msra.mxu0 %v857
      %896 = vmatprep.subr.mxu0 0.0
      %897 = vmatpush2.msra.mxu0 0.0
      %898 = vmatprep.subr.mxu0 0.0
      %899 = vmatpush2.msra.mxu0 0.0
      %900 = vmatprep.subr.mxu0 0.0
      %901 = vmatpush2.msra.mxu0 0.0
      %902 = vmatprep.subr.mxu0 0.0
      %903 = vmatpush2.msra.mxu0 0.0
      %904 = vmatprep.subr.mxu0 0.0
      %905 = vmatpush2.msra.mxu0 0.0
      %906 = vmatprep.subr.mxu0 0.0
      %907 = vmatpush2.msra.mxu0 0.0
      %908 = vmatprep.subr.mxu0 0.0
      %909 = vmatpush2.msra.mxu0 0.0
      %910 = vmatprep.subr.mxu0 0.0
      %911 = vmatpush2.msra.mxu0 0.0
      %912 = vmatprep.subr.mxu0 0.0
      %913 = vmatpush2.msra.mxu0 0.0
      %914 = vmatprep.subr.mxu0 0.0
      %915 = vmatpush2.msra.mxu0 0.0
      %916 = vmatprep.subr.mxu0 0.0
      %917 = vmatpush2.msra.mxu0 0.0
      %918 = vmatprep.subr.mxu0 0.0
      %919 = vmatpush2.msra.mxu0 0.0
      %920 = vmatprep.subr.mxu0 0.0
      %921 = vmatpush2.msra.mxu0 0.0
      %922 = vmatprep.subr.mxu0 0.0
      %923 = vmatpush2.msra.mxu0 0.0
      %924 = vmatprep.subr.mxu0 0.0
      %925 = vmatpush2.msra.mxu0 0.0
      %926 = vmatprep.subr.mxu0 0.0
      %927 = vmatpush2.msra.mxu0 0.0
      %928 = vmatprep.mubr.f32.mxu0 0.0
      %929 = vmatmul.mubr.f32.gmra.mxu0 %v862
      %v930 = vpop.f32.mrf.mxu0
      %v931 = vadd.f32 0.0, %v930
      %v932 = vpop.f32.mrf.mxu0
      %933 = vdwg.mxu0
      %v934 = vadd.f32 %v853, %v931
      %v936 = vlaneseq
      %v937 = vshrl.u32 %v936, 7
      %v938 = vsub.s32 0, %v937
      %v939 = vrot.slane %v696, %v938
      %v941 = vadd.f32 %v934, %v939
      %v942 = vmax.f32 %v941, -30.0
      %v943 = vmin.f32 %v942, 20.0
      %v944 = vmul.f32 %v943, 0.5
      %v945 = vmul.f32 %v944, 1.442695
      %v946 = vpow.pop %v945
      %v947 = vld [vmem:[%s438] sm:$0xff]
      %949 = vrot.lane.b32.xlu0 %v947, 32
      %v950 = vpop.permute.xlu0 %949
      %v952 = vmul.f32 %v946, %v950
      %954 = vrot.lane.b32.xlu0 %v952, 96
      %v955 = vpop.permute.xlu0 %954
      %v957 = vadd.f32 %v941, %v955
      %v958 = vmul.f32 %v957, 5.4899807
      %v959 = vld [vmem:[%s11] sm:$0x1]
      %v960 = vrot.slane %v958, 7
      %v961 = vsel %vm694, 0.0, %v960
      %v962 = vrot.slane %v958, 1
      %v963 = vsel %vm695, 0.0, %v962
      %v964 = vld [vmem:[%s10] sm:$0xff]
      %v965 = vld [vmem:[%s10 + $0x8] sm:$0xff]
      %v966 = vld [vmem:[%s10 + $0x10] sm:$0xff]
      %v967 = vld [vmem:[%s10 + $0x18] sm:$0xff]
      %s968 = scalar_lea.vmem %s10, 32
      %v969 = vld [vmem:[%s968] sm:$0xff]
      %v970 = vld [vmem:[%s968 + $0x8] sm:$0xff]
      %v971 = vld [vmem:[%s968 + $0x10] sm:$0xff]
      %v972 = vld [vmem:[%s968 + $0x18] sm:$0xff]
      %v974 = vsel %vm455, %v958, 0
      %976 = vmatprep.subr.mxu0 0.0
      %977 = vmatpush1.msra.mxu0 0.0
      %978 = vmatprep.subr.mxu0 0.0
      %979 = vmatpush1.msra.mxu0 0.0
      %980 = vmatprep.subr.mxu0 0.0
      %981 = vmatpush1.msra.mxu0 0.0
      %982 = vmatprep.subr.mxu0 0.0
      %983 = vmatpush1.msra.mxu0 0.0
      %984 = vmatprep.subr.mxu0 0.0
      %985 = vmatpush1.msra.mxu0 0.0
      %986 = vmatprep.subr.mxu0 0.0
      %987 = vmatpush1.msra.mxu0 0.0
      %988 = vmatprep.subr.mxu0 0.0
      %989 = vmatpush1.msra.mxu0 0.0
      %990 = vmatprep.subr.mxu0 0.0
      %991 = vmatpush1.msra.mxu0 0.0
      %992 = vmatprep.subr.mxu0 0.0
      %993 = vmatpush1.msra.mxu0 0.0
      %994 = vmatprep.subr.mxu0 0.0
      %995 = vmatpush1.msra.mxu0 0.0
      %996 = vmatprep.subr.mxu0 0.0
      %997 = vmatpush1.msra.mxu0 0.0
      %998 = vmatprep.subr.mxu0 0.0
      %999 = vmatpush1.msra.mxu0 0.0
      %1000 = vmatprep.subr.mxu0 0.0
      %1001 = vmatpush1.msra.mxu0 %v972
      %1002 = vmatprep.subr.mxu0 0.0
      %1003 = vmatpush1.msra.mxu0 %v971
      %1004 = vmatprep.subr.mxu0 0.0
      %1005 = vmatpush1.msra.mxu0 %v970
      %1006 = vmatprep.subr.mxu0 0.0
      %1007 = vmatpush1.msra.mxu0 %v969
      %1008 = vmatprep.subr.mxu0 0.0
      %1009 = vmatpush2.msra.mxu0 0.0
      %1010 = vmatprep.subr.mxu0 0.0
      %1011 = vmatpush2.msra.mxu0 0.0
      %1012 = vmatprep.subr.mxu0 0.0
      %1013 = vmatpush2.msra.mxu0 0.0
      %1014 = vmatprep.subr.mxu0 0.0
      %1015 = vmatpush2.msra.mxu0 0.0
      %1016 = vmatprep.subr.mxu0 0.0
      %1017 = vmatpush2.msra.mxu0 0.0
      %1018 = vmatprep.subr.mxu0 0.0
      %1019 = vmatpush2.msra.mxu0 0.0
      %1020 = vmatprep.subr.mxu0 0.0
      %1021 = vmatpush2.msra.mxu0 0.0
      %1022 = vmatprep.subr.mxu0 0.0
      %1023 = vmatpush2.msra.mxu0 0.0
      %1024 = vmatprep.subr.mxu0 0.0
      %1025 = vmatpush2.msra.mxu0 0.0
      %1026 = vmatprep.subr.mxu0 0.0
      %1027 = vmatpush2.msra.mxu0 0.0
      %1028 = vmatprep.subr.mxu0 0.0
      %1029 = vmatpush2.msra.mxu0 0.0
      %1030 = vmatprep.subr.mxu0 0.0
      %1031 = vmatpush2.msra.mxu0 0.0
      %1032 = vmatprep.subr.mxu0 0.0
      %1033 = vmatpush2.msra.mxu0 0.0
      %1034 = vmatprep.subr.mxu0 0.0
      %1035 = vmatpush2.msra.mxu0 0.0
      %1036 = vmatprep.subr.mxu0 0.0
      %1037 = vmatpush2.msra.mxu0 0.0
      %1038 = vmatprep.subr.mxu0 0.0
      %1039 = vmatpush2.msra.mxu0 0.0
      %1040 = vmatprep.mubr.f32.mxu0 0.0
      %1041 = vmatmul.mubr.f32.gmra.mxu0 %v974
      %v1042 = vpop.f32.mrf.mxu0
      %v1043 = vadd.f32 0.0, %v1042
      %v1044 = vpop.f32.mrf.mxu0
      %1045 = vdwg.mxu0
      %v1047 = vsel %vm455, %v961, 0
      %1049 = vmatprep.subr.mxu0 0.0
      %1050 = vmatpush1.msra.mxu0 0.0
      %1051 = vmatprep.subr.mxu0 0.0
      %1052 = vmatpush1.msra.mxu0 0.0
      %1053 = vmatprep.subr.mxu0 0.0
      %1054 = vmatpush1.msra.mxu0 0.0
      %1055 = vmatprep.subr.mxu0 0.0
      %1056 = vmatpush1.msra.mxu0 0.0
      %1057 = vmatprep.subr.mxu0 0.0
      %1058 = vmatpush1.msra.mxu0 0.0
      %1059 = vmatprep.subr.mxu0 0.0
      %1060 = vmatpush1.msra.mxu0 0.0
      %1061 = vmatprep.subr.mxu0 0.0
      %1062 = vmatpush1.msra.mxu0 0.0
      %1063 = vmatprep.subr.mxu0 0.0
      %1064 = vmatpush1.msra.mxu0 0.0
      %1065 = vmatprep.subr.mxu0 0.0
      %1066 = vmatpush1.msra.mxu0 0.0
      %1067 = vmatprep.subr.mxu0 0.0
      %1068 = vmatpush1.msra.mxu0 0.0
      %1069 = vmatprep.subr.mxu0 0.0
      %1070 = vmatpush1.msra.mxu0 0.0
      %1071 = vmatprep.subr.mxu0 0.0
      %1072 = vmatpush1.msra.mxu0 0.0
      %1073 = vmatprep.subr.mxu0 0.0
      %1074 = vmatpush1.msra.mxu0 %v967
      %1075 = vmatprep.subr.mxu0 0.0
      %1076 = vmatpush1.msra.mxu0 %v966
      %1077 = vmatprep.subr.mxu0 0.0
      %1078 = vmatpush1.msra.mxu0 %v965
      %1079 = vmatprep.subr.mxu0 0.0
      %1080 = vmatpush1.msra.mxu0 %v964
      %1081 = vmatprep.subr.mxu0 0.0
      %1082 = vmatpush2.msra.mxu0 0.0
      %1083 = vmatprep.subr.mxu0 0.0
      %1084 = vmatpush2.msra.mxu0 0.0
      %1085 = vmatprep.subr.mxu0 0.0
      %1086 = vmatpush2.msra.mxu0 0.0
      %1087 = vmatprep.subr.mxu0 0.0
      %1088 = vmatpush2.msra.mxu0 0.0
      %1089 = vmatprep.subr.mxu0 0.0
      %1090 = vmatpush2.msra.mxu0 0.0
      %1091 = vmatprep.subr.mxu0 0.0
      %1092 = vmatpush2.msra.mxu0 0.0
      %1093 = vmatprep.subr.mxu0 0.0
      %1094 = vmatpush2.msra.mxu0 0.0
      %1095 = vmatprep.subr.mxu0 0.0
      %1096 = vmatpush2.msra.mxu0 0.0
      %1097 = vmatprep.subr.mxu0 0.0
      %1098 = vmatpush2.msra.mxu0 0.0
      %1099 = vmatprep.subr.mxu0 0.0
      %1100 = vmatpush2.msra.mxu0 0.0
      %1101 = vmatprep.subr.mxu0 0.0
      %1102 = vmatpush2.msra.mxu0 0.0
      %1103 = vmatprep.subr.mxu0 0.0
      %1104 = vmatpush2.msra.mxu0 0.0
      %1105 = vmatprep.subr.mxu0 0.0
      %1106 = vmatpush2.msra.mxu0 0.0
      %1107 = vmatprep.subr.mxu0 0.0
      %1108 = vmatpush2.msra.mxu0 0.0
      %1109 = vmatprep.subr.mxu0 0.0
      %1110 = vmatpush2.msra.mxu0 0.0
      %1111 = vmatprep.subr.mxu0 0.0
      %1112 = vmatpush2.msra.mxu0 0.0
      %1113 = vmatprep.mubr.f32.mxu0 0.0
      %1114 = vmatmul.mubr.f32.gmra.mxu0 %v1047
      %v1115 = vpop.f32.mrf.mxu0
      %v1116 = vadd.f32 %v1043, %v1115
      %v1117 = vpop.f32.mrf.mxu0
      %1118 = vdwg.mxu0
      %s1119 = scalar_lea.vmem %s10, 64
      %v1120 = vld [vmem:[%s1119] sm:$0xff]
      %v1121 = vld [vmem:[%s1119 + $0x8] sm:$0xff]
      %v1122 = vld [vmem:[%s1119 + $0x10] sm:$0xff]
      %v1123 = vld [vmem:[%s1119 + $0x18] sm:$0xff]
      %v1125 = vsel %vm455, %v963, 0
      %1127 = vmatprep.subr.mxu0 0.0
      %1128 = vmatpush1.msra.mxu0 0.0
      %1129 = vmatprep.subr.mxu0 0.0
      %1130 = vmatpush1.msra.mxu0 0.0
      %1131 = vmatprep.subr.mxu0 0.0
      %1132 = vmatpush1.msra.mxu0 0.0
      %1133 = vmatprep.subr.mxu0 0.0
      %1134 = vmatpush1.msra.mxu0 0.0
      %1135 = vmatprep.subr.mxu0 0.0
      %1136 = vmatpush1.msra.mxu0 0.0
      %1137 = vmatprep.subr.mxu0 0.0
      %1138 = vmatpush1.msra.mxu0 0.0
      %1139 = vmatprep.subr.mxu0 0.0
      %1140 = vmatpush1.msra.mxu0 0.0
      %1141 = vmatprep.subr.mxu0 0.0
      %1142 = vmatpush1.msra.mxu0 0.0
      %1143 = vmatprep.subr.mxu0 0.0
      %1144 = vmatpush1.msra.mxu0 0.0
      %1145 = vmatprep.subr.mxu0 0.0
      %1146 = vmatpush1.msra.mxu0 0.0
      %1147 = vmatprep.subr.mxu0 0.0
      %1148 = vmatpush1.msra.mxu0 0.0
      %1149 = vmatprep.subr.mxu0 0.0
      %1150 = vmatpush1.msra.mxu0 0.0
      %1151 = vmatprep.subr.mxu0 0.0
      %1152 = vmatpush1.msra.mxu0 %v1123
      %1153 = vmatprep.subr.mxu0 0.0
      %1154 = vmatpush1.msra.mxu0 %v1122
      %1155 = vmatprep.subr.mxu0 0.0
      %1156 = vmatpush1.msra.mxu0 %v1121
      %1157 = vmatprep.subr.mxu0 0.0
      %1158 = vmatpush1.msra.mxu0 %v1120
      %1159 = vmatprep.subr.mxu0 0.0
      %1160 = vmatpush2.msra.mxu0 0.0
      %1161 = vmatprep.subr.mxu0 0.0
      %1162 = vmatpush2.msra.mxu0 0.0
      %1163 = vmatprep.subr.mxu0 0.0
      %1164 = vmatpush2.msra.mxu0 0.0
      %1165 = vmatprep.subr.mxu0 0.0
      %1166 = vmatpush2.msra.mxu0 0.0
      %1167 = vmatprep.subr.mxu0 0.0
      %1168 = vmatpush2.msra.mxu0 0.0
      %1169 = vmatprep.subr.mxu0 0.0
      %1170 = vmatpush2.msra.mxu0 0.0
      %1171 = vmatprep.subr.mxu0 0.0
      %1172 = vmatpush2.msra.mxu0 0.0
      %1173 = vmatprep.subr.mxu0 0.0
      %1174 = vmatpush2.msra.mxu0 0.0
      %1175 = vmatprep.subr.mxu0 0.0
      %1176 = vmatpush2.msra.mxu0 0.0
      %1177 = vmatprep.subr.mxu0 0.0
      %1178 = vmatpush2.msra.mxu0 0.0
      %1179 = vmatprep.subr.mxu0 0.0
      %1180 = vmatpush2.msra.mxu0 0.0
      %1181 = vmatprep.subr.mxu0 0.0
      %1182 = vmatpush2.msra.mxu0 0.0
      %1183 = vmatprep.subr.mxu0 0.0
      %1184 = vmatpush2.msra.mxu0 0.0
      %1185 = vmatprep.subr.mxu0 0.0
      %1186 = vmatpush2.msra.mxu0 0.0
      %1187 = vmatprep.subr.mxu0 0.0
      %1188 = vmatpush2.msra.mxu0 0.0
      %1189 = vmatprep.subr.mxu0 0.0
      %1190 = vmatpush2.msra.mxu0 0.0
      %1191 = vmatprep.mubr.f32.mxu0 0.0
      %1192 = vmatmul.mubr.f32.gmra.mxu0 %v1125
      %v1193 = vpop.f32.mrf.mxu0
      %v1194 = vadd.f32 0.0, %v1193
      %v1195 = vpop.f32.mrf.mxu0
      %1196 = vdwg.mxu0
      %v1197 = vadd.f32 %v1116, %v1194
      %v1199 = vlaneseq
      %v1200 = vshrl.u32 %v1199, 7
      %v1201 = vsub.s32 0, %v1200
      %v1202 = vrot.slane %v959, %v1201
      %v1204 = vadd.f32 %v1197, %v1202
      %1205 = vst [vmem:[%s442] sm:$0xff] %v1204
      %p1206 = scmp.lt.s32.totalorder %s23, 1
      %s1207 = scalar_select %p1206, %s23, 1
      %s1208 = smul.addr %s1207, 8
      %s1209 = scalar_lea.vmem %s12, %s1208
      // Predicated region
      $region69: #{forward.1} parent=67 // pred_check
        %p1210 = pneg %p308
      $region70: #{forward.1} parent=67 // pred_check_branch
        %1212 = sbr.rel (%p1210) target = $region72
      $region71: #{forward.1} parent=67 // pred_region
        _
      $region72: #{forward.1} parent=67 // pred_fallthru
        _
    $region68: #{forward.1} parent=5 // pred_fallthru
      _
    %p1213 = scmp.le.s32.totalorder 2, %s18
    // Predicated region
    $region73: #{forward.1} parent=5 // pred_check
      %p1214 = pneg %p1213
    $region74: #{forward.1} parent=5 // pred_check_branch
      %1216 = sbr.rel (%p1214) target = $region76
    $region75: #{forward.1} parent=5 // pred_region
      %s1217 = ssub.s32 %s18, 2
      // Predicated region
      $region77: #{forward.1} parent=75 // pred_check
        %p1218 = pneg %p314
      $region78: #{forward.1} parent=75 // pred_check_branch
        %1220 = sbr.rel (%p1218) target = $region80
      $region79: #{forward.1} parent=75 // pred_region
        %p1221 = scmp.lt.s32.totalorder %s24, 1
        %s1222 = scalar_select %p1221, %s24, 1
        %s1223 = smul.addr %s1222, 8
        %s1224 = scalar_lea.vmem %s12, %s1223
      $region80: #{forward.1} parent=75 // pred_fallthru
        _
    $region76: #{forward.1} parent=5 // pred_fallthru
      _
  $region6: #{forward.1} parent=0 // loop_footer
    %s22 = sadd.s32 1, %s18
  $region7: #{forward.1} parent=0 // loop_footer_branch
    %17 = sbr.rel target = $region3
  $region8: #{forward.1} parent=0 // loop_exit
    _

</llo_original>
